<compile_context>
chip_gen: v6e
topology: v6e:2x2x1
jax: 0.10.0
libtpu: 0.0.40
codegen_flags: <defaults>
</compile_context>

<pallas_src>
import math

import jax
import jax.numpy as jnp
import numpy as np
from jax import lax
from jax.experimental import pallas as pl
from jax.experimental.pallas import tpu as pltpu

BN_EPS = 1e-5


# --------------------------------------------------------------------------
# Kernel factory: the full DenseModule forward as ONE Pallas invocation.
# --------------------------------------------------------------------------
def _make_dense_module_kernel(depth, k, H, W, T):
    cmid = 4 * k
    taps = [(kh - 1, kw - 1) for kh in range(3) for kw in range(3)]

    def _elu(y):
        # ELU(alpha=1); clamp the negative branch so exp never overflows.
        return jnp.where(y > 0.0, y, jnp.exp(jnp.minimum(y, 0.0)) - 1.0)

    def _normalize(z):
        # training-mode BatchNorm stats: per-channel mean/var over T, biased.
        mean = jnp.mean(z, axis=1, keepdims=True)
        var = jnp.mean(jnp.square(z - mean), axis=1, keepdims=True)
        return (z - mean) * lax.rsqrt(var + BN_EPS)

    def kernel(*refs):
        # refs layout:
        #   x (C0, T), masks (9, 1, T),
        #   block i: (i+1) x [g1_j, b1_j, w1_j] chunk params, then g2, b2, w3,
        #   then `depth` output refs, each (k, T).
        x_ref, mask_ref = refs[0], refs[1]
        out_refs = refs[len(refs) - depth:]
        p = 2

        # Dense connectivity: keep one normalized copy per feature chunk
        # (original input + each block's new k channels) instead of
        # materialising the channel concatenation.
        norm_chunks = [_normalize(x_ref[...])]

        for i in range(depth):
            # ---- bottleneck: BN -> ELU -> 1x1 conv (in_ch -> 4k), per chunk
            h = None
            for j in range(i + 1):
                g1, b1, w1 = refs[p], refs[p + 1], refs[p + 2]
                p += 3
                y = _elu(norm_chunks[j] * g1[...] + b1[...])
                term = jnp.dot(w1[...].astype(jnp.bfloat16),
                               y.astype(jnp.bfloat16),
                               preferred_element_type=jnp.float32)
                h = term if h is None else h + term

            # ---- layer: BN -> ELU -> 3x3 conv (4k -> k), zero padding 1
            g2, b2, w3 = refs[p], refs[p + 1], refs[p + 2]
            p += 3
            y2 = _elu(_normalize(h) * g2[...] + b2[...])

            # 9 taps = static lane rolls of the flattened spatial axis
            #          + precomputed 0/1 boundary masks (zero padding).
            patches = []
            for t, (dh, dw) in enumerate(taps):
                s = dh * W + dw
                rolled = y2 if s == 0 else pltpu.roll(y2, shift=(-s) % T, axis=1)
                patches.append(rolled * mask_ref[t])

            w3v = w3[...].astype(jnp.bfloat16)
            if cmid % 8 == 0:
                # fused single MXU matmul: (k, 9*4k) @ (9*4k, T)
                patch = jnp.concatenate(patches, axis=0).astype(jnp.bfloat16)
                new = jnp.dot(w3v, patch, preferred_element_type=jnp.float32)
            else:
                new = None
                for t in range(9):
                    term = jnp.dot(w3v[:, t * cmid:(t + 1) * cmid],
                                   patches[t].astype(jnp.bfloat16),
                                   preferred_element_type=jnp.float32)
                    new = term if new is None else new + term

            out_refs[i][...] = new
            if i + 1 < depth:
                norm_chunks.append(_normalize(new))

    return kernel


# --------------------------------------------------------------------------
# Glue (plain JAX / numpy): masks, weight reshuffling, pallas_call wrapper
# --------------------------------------------------------------------------
def _build_tap_masks(N, H, W):
    """(9, 1, T) 0/1 masks; zero where the 3x3 window falls on zero padding."""
    T = N * H * W
    r = np.arange(T)
    h = (r // W) % H
    w = r % W
    masks = []
    for kh in range(3):
        for kw in range(3):
            dh, dw = kh - 1, kw - 1
            valid = ((h + dh >= 0) & (h + dh < H) &
                     (w + dw >= 0) & (w + dw < W))
            masks.append(valid.astype(np.float32))
    return jnp.asarray(np.stack(masks)[:, None, :])


def dense_module_forward(x_nchw, params, k):
    """Forward of DenseModule.  x_nchw: (N, C0, H, W), params: list of dicts."""
    N, C0, H, W = x_nchw.shape
    T = N * H * W
    depth = len(params)
    cmid = 4 * k
    c_out = C0 + depth * k

    # NCHW -> lane-dense (C, T); flat spatial index = n*H*W + h*W + w
    x_ct = jnp.transpose(x_nchw.reshape(N, C0, H * W), (1, 0, 2))
    x_ct = x_ct.reshape(C0, T).astype(jnp.float32)
    masks = _build_tap_masks(N, H, W)

    chunk_sizes = [C0] + [k] * depth
    inputs = [x_ct, masks]
    for i, p in enumerate(params):
        offs = np.cumsum([0] + chunk_sizes[:i + 1])
        g1 = jnp.asarray(p["g1"], jnp.float32)
        b1 = jnp.asarray(p["b1"], jnp.float32)
        w1 = jnp.asarray(p["w1"], jnp.float32).reshape(cmid, -1)
        for j in range(i + 1):
            lo, hi = int(offs[j]), int(offs[j + 1])
            inputs.append(g1[lo:hi].reshape(-1, 1))
            inputs.append(b1[lo:hi].reshape(-1, 1))
            inputs.append(w1[:, lo:hi])
        inputs.append(jnp.asarray(p["g2"], jnp.float32).reshape(-1, 1))
        inputs.append(jnp.asarray(p["b2"], jnp.float32).reshape(-1, 1))
        # (k, 4k, 3, 3) -> (k, 9*4k), tap index t = kh*3 + kw
        w3 = jnp.transpose(jnp.asarray(p["w2"], jnp.float32),
                           (0, 2, 3, 1)).reshape(k, 9 * cmid)
        inputs.append(w3)

    kernel = _make_dense_module_kernel(depth, k, H, W, T)

    # advisory cost estimate: conv matmul flops, ELU exps, HBM bytes
    flops = sum(2 * cmid * (C0 + i * k) * T + 2 * k * 9 * cmid * T
                for i in range(depth))
    transcendentals = sum((C0 + i * k) + cmid for i in range(depth)) * T
    bytes_accessed = 4 * (sum(int(np.prod(a.shape)) for a in inputs)
                          + depth * k * T)

    vmem = pl.BlockSpec(memory_space=pltpu.MemorySpace.VMEM)
    new_feats = pl.pallas_call(
        kernel,
        out_shape=tuple(jax.ShapeDtypeStruct((k, T), jnp.float32)
                        for _ in range(depth)),
        in_specs=[vmem] * len(inputs),
        out_specs=tuple(vmem for _ in range(depth)),
        compiler_params=pltpu.CompilerParams(
            vmem_limit_bytes=32 * 1024 * 1024),
        cost_estimate=pl.CostEstimate(flops=int(flops),
                                      transcendentals=int(transcendentals),
                                      bytes_accessed=int(bytes_accessed)),
    )(*inputs)

    # dense concatenation (original input channels pass through unchanged)
    y_ct = jnp.concatenate([x_ct] + list(new_feats), axis=0)
    return jnp.transpose(y_ct.reshape(c_out, N, H, W), (1, 0, 2, 3))


# --------------------------------------------------------------------------
# Pure-JAX f32 reference (sanity check)
# --------------------------------------------------------------------------
def _ref_preact(x, gamma, beta, w, pad):
    mean = x.mean(axis=(0, 2, 3), keepdims=True)
    var = ((x - mean) ** 2).mean(axis=(0, 2, 3), keepdims=True)
    y = (x - mean) / jnp.sqrt(var + BN_EPS)
    y = y * gamma[None, :, None, None] + beta[None, :, None, None]
    y = jnp.where(y > 0.0, y, jnp.expm1(jnp.minimum(y, 0.0)))
    return lax.conv_general_dilated(
        y, w, window_strides=(1, 1), padding=((pad, pad), (pad, pad)),
        dimension_numbers=("NCHW", "OIHW", "NCHW"))


def _ref_forward(x, params):
    for p in params:
        r = x
        h = _ref_preact(x, p["g1"], p["b1"], p["w1"], 0)
        h = _ref_preact(h, p["g2"], p["b2"], p["w2"], 1)
        x = jnp.concatenate([r, h], axis=1)
    return x


# --------------------------------------------------------------------------
if __name__ == "__main__":
    in_channels, depth, k = 4, 2, 4
    N, H, W = 2, 16, 16

    key = jax.random.PRNGKey(0)
    key, kx = jax.random.split(key)
    x = jax.random.normal(kx, (N, in_channels, H, W), dtype=jnp.float32)

    # Deterministic params (PyTorch-style: conv uniform(+-1/sqrt(fan_in)),
    # BN affine randomized mildly to exercise the gamma/beta path).
    params = []
    for i in range(depth):
        in_ch = in_channels + i * k
        key, k1, k2, k3, k4, k5, k6 = jax.random.split(key, 7)
        bound1 = 1.0 / math.sqrt(in_ch)          # 1x1 conv fan_in = in_ch
        bound2 = 1.0 / math.sqrt(4 * k * 9)      # 3x3 conv fan_in = 4k*9
        params.append({
            "g1": 1.0 + 0.1 * jax.random.normal(k1, (in_ch,), jnp.float32),
            "b1": 0.1 * jax.random.normal(k2, (in_ch,), jnp.float32),
            "w1": jax.random.uniform(k3, (4 * k, in_ch, 1, 1), jnp.float32,
                                     -bound1, bound1),
            "g2": 1.0 + 0.1 * jax.random.normal(k4, (4 * k,), jnp.float32),
            "b2": 0.1 * jax.random.normal(k5, (4 * k,), jnp.float32),
            "w2": jax.random.uniform(k6, (k, 4 * k, 3, 3), jnp.float32,
                                     -bound2, bound2),
        })

    out = dense_module_forward(x, params, k)
    out = jax.block_until_ready(out)
    assert out.shape == (N, in_channels + depth * k, H, W)

    ref = _ref_forward(x, params)
    np.testing.assert_allclose(np.asarray(out), np.asarray(ref),
                               rtol=5e-2, atol=5e-2)
    print("KERNEL_OK")
</pallas_src>

<mosaic_0001>
module attributes {stable_mosaic.version = 11 : i64} {
  func.func @kernel(%arg0: memref<4x512xf32, #tpu.memory_space<vmem>>, %arg1: memref<9x1x512xf32, #tpu.memory_space<vmem>>, %arg2: memref<4x1xf32, #tpu.memory_space<vmem>>, %arg3: memref<4x1xf32, #tpu.memory_space<vmem>>, %arg4: memref<16x4xf32, #tpu.memory_space<vmem>>, %arg5: memref<16x1xf32, #tpu.memory_space<vmem>>, %arg6: memref<16x1xf32, #tpu.memory_space<vmem>>, %arg7: memref<4x144xf32, #tpu.memory_space<vmem>>, %arg8: memref<4x1xf32, #tpu.memory_space<vmem>>, %arg9: memref<4x1xf32, #tpu.memory_space<vmem>>, %arg10: memref<16x4xf32, #tpu.memory_space<vmem>>, %arg11: memref<4x1xf32, #tpu.memory_space<vmem>>, %arg12: memref<4x1xf32, #tpu.memory_space<vmem>>, %arg13: memref<16x4xf32, #tpu.memory_space<vmem>>, %arg14: memref<16x1xf32, #tpu.memory_space<vmem>>, %arg15: memref<16x1xf32, #tpu.memory_space<vmem>>, %arg16: memref<4x144xf32, #tpu.memory_space<vmem>>, %arg17: memref<4x512xf32, #tpu.memory_space<vmem>>, %arg18: memref<4x512xf32, #tpu.memory_space<vmem>>) attributes {dimension_semantics = [], scalar_prefetch = 0 : i64, scratch_operands = 0 : i64, tpu.core_type = #tpu.core_type<tc>} {
    %c0 = arith.constant 0 : index
    %c0_0 = arith.constant 0 : index
    %0 = vector.load %arg0[%c0, %c0_0] : memref<4x512xf32, #tpu.memory_space<vmem>>, vector<4x512xf32>
    %cst = arith.constant dense<0.000000e+00> : vector<4xf32>
    %1 = vector.multi_reduction <add>, %0, %cst [1] : vector<4x512xf32> to vector<4xf32>
    %2 = vector.shape_cast %1 : vector<4xf32> to vector<4x1xf32>
    %cst_1 = arith.constant 5.120000e+02 : f32
    %3 = vector.broadcast %cst_1 : f32 to vector<4x1xf32>
    %4 = arith.divf %2, %3 : vector<4x1xf32>
    %5 = vector.broadcast %4 : vector<4x1xf32> to vector<4x512xf32>
    %6 = arith.subf %0, %5 : vector<4x512xf32>
    %7 = arith.mulf %6, %6 : vector<4x512xf32>
    %cst_2 = arith.constant dense<0.000000e+00> : vector<4xf32>
    %8 = vector.multi_reduction <add>, %7, %cst_2 [1] : vector<4x512xf32> to vector<4xf32>
    %9 = vector.shape_cast %8 : vector<4xf32> to vector<4x1xf32>
    %cst_3 = arith.constant 5.120000e+02 : f32
    %10 = vector.broadcast %cst_3 : f32 to vector<4x1xf32>
    %11 = arith.divf %9, %10 : vector<4x1xf32>
    %12 = vector.broadcast %4 : vector<4x1xf32> to vector<4x512xf32>
    %13 = arith.subf %0, %12 : vector<4x512xf32>
    %cst_4 = arith.constant 9.99999974E-6 : f32
    %14 = vector.broadcast %cst_4 : f32 to vector<4x1xf32>
    %15 = arith.addf %11, %14 : vector<4x1xf32>
    %16 = math.rsqrt %15 : vector<4x1xf32>
    %17 = vector.broadcast %16 : vector<4x1xf32> to vector<4x512xf32>
    %18 = arith.mulf %13, %17 : vector<4x512xf32>
    %c0_5 = arith.constant 0 : index
    %c0_6 = arith.constant 0 : index
    %19 = vector.load %arg2[%c0_5, %c0_6] : memref<4x1xf32, #tpu.memory_space<vmem>>, vector<4x1xf32>
    %20 = vector.broadcast %19 : vector<4x1xf32> to vector<4x512xf32>
    %21 = arith.mulf %18, %20 : vector<4x512xf32>
    %c0_7 = arith.constant 0 : index
    %c0_8 = arith.constant 0 : index
    %22 = vector.load %arg3[%c0_7, %c0_8] : memref<4x1xf32, #tpu.memory_space<vmem>>, vector<4x1xf32>
    %23 = vector.broadcast %22 : vector<4x1xf32> to vector<4x512xf32>
    %24 = arith.addf %21, %23 : vector<4x512xf32>
    %cst_9 = arith.constant 0.000000e+00 : f32
    %25 = vector.broadcast %cst_9 : f32 to vector<4x512xf32>
    %26 = arith.cmpf ogt, %24, %25 : vector<4x512xf32>
    %cst_10 = arith.constant 0.000000e+00 : f32
    %27 = vector.broadcast %cst_10 : f32 to vector<4x512xf32>
    %28 = arith.minimumf %24, %27 : vector<4x512xf32>
    %29 = math.exp %28 : vector<4x512xf32>
    %cst_11 = arith.constant 1.000000e+00 : f32
    %30 = vector.broadcast %cst_11 : f32 to vector<4x512xf32>
    %31 = arith.subf %29, %30 : vector<4x512xf32>
    %32 = arith.select %26, %24, %31 : vector<4x512xi1>, vector<4x512xf32>
    %c0_12 = arith.constant 0 : index
    %c0_13 = arith.constant 0 : index
    %33 = vector.load %arg4[%c0_12, %c0_13] : memref<16x4xf32, #tpu.memory_space<vmem>>, vector<16x4xf32>
    %34 = arith.truncf %33 : vector<16x4xf32> to vector<16x4xbf16>
    %35 = arith.truncf %32 : vector<4x512xf32> to vector<4x512xbf16>
    %cst_14 = arith.constant dense<0.000000e+00> : vector<16x512xf32>
    %36 = tpu.matmul %34, %35, %cst_14 {dimension_numbers = #tpu.dot_dimension_numbers<[1], [0], [0], [1], [0, 0, 1, 1], [], []>} : vector<16x4xbf16>, vector<4x512xbf16>, vector<16x512xf32> -> vector<16x512xf32>
    %cst_15 = arith.constant dense<0.000000e+00> : vector<16xf32>
    %37 = vector.multi_reduction <add>, %36, %cst_15 [1] : vector<16x512xf32> to vector<16xf32>
    %38 = vector.shape_cast %37 : vector<16xf32> to vector<16x1xf32>
    %cst_16 = arith.constant 5.120000e+02 : f32
    %39 = vector.broadcast %cst_16 : f32 to vector<16x1xf32>
    %40 = arith.divf %38, %39 : vector<16x1xf32>
    %41 = vector.broadcast %40 : vector<16x1xf32> to vector<16x512xf32>
    %42 = arith.subf %36, %41 : vector<16x512xf32>
    %43 = arith.mulf %42, %42 : vector<16x512xf32>
    %cst_17 = arith.constant dense<0.000000e+00> : vector<16xf32>
    %44 = vector.multi_reduction <add>, %43, %cst_17 [1] : vector<16x512xf32> to vector<16xf32>
    %45 = vector.shape_cast %44 : vector<16xf32> to vector<16x1xf32>
    %cst_18 = arith.constant 5.120000e+02 : f32
    %46 = vector.broadcast %cst_18 : f32 to vector<16x1xf32>
    %47 = arith.divf %45, %46 : vector<16x1xf32>
    %48 = vector.broadcast %40 : vector<16x1xf32> to vector<16x512xf32>
    %49 = arith.subf %36, %48 : vector<16x512xf32>
    %cst_19 = arith.constant 9.99999974E-6 : f32
    %50 = vector.broadcast %cst_19 : f32 to vector<16x1xf32>
    %51 = arith.addf %47, %50 : vector<16x1xf32>
    %52 = math.rsqrt %51 : vector<16x1xf32>
    %53 = vector.broadcast %52 : vector<16x1xf32> to vector<16x512xf32>
    %54 = arith.mulf %49, %53 : vector<16x512xf32>
    %c0_20 = arith.constant 0 : index
    %c0_21 = arith.constant 0 : index
    %55 = vector.load %arg5[%c0_20, %c0_21] : memref<16x1xf32, #tpu.memory_space<vmem>>, vector<16x1xf32>
    %56 = vector.broadcast %55 : vector<16x1xf32> to vector<16x512xf32>
    %57 = arith.mulf %54, %56 : vector<16x512xf32>
    %c0_22 = arith.constant 0 : index
    %c0_23 = arith.constant 0 : index
    %58 = vector.load %arg6[%c0_22, %c0_23] : memref<16x1xf32, #tpu.memory_space<vmem>>, vector<16x1xf32>
    %59 = vector.broadcast %58 : vector<16x1xf32> to vector<16x512xf32>
    %60 = arith.addf %57, %59 : vector<16x512xf32>
    %cst_24 = arith.constant 0.000000e+00 : f32
    %61 = vector.broadcast %cst_24 : f32 to vector<16x512xf32>
    %62 = arith.cmpf ogt, %60, %61 : vector<16x512xf32>
    %cst_25 = arith.constant 0.000000e+00 : f32
    %63 = vector.broadcast %cst_25 : f32 to vector<16x512xf32>
    %64 = arith.minimumf %60, %63 : vector<16x512xf32>
    %65 = math.exp %64 : vector<16x512xf32>
    %cst_26 = arith.constant 1.000000e+00 : f32
    %66 = vector.broadcast %cst_26 : f32 to vector<16x512xf32>
    %67 = arith.subf %65, %66 : vector<16x512xf32>
    %68 = arith.select %62, %60, %67 : vector<16x512xi1>, vector<16x512xf32>
    %c17_i32 = arith.constant 17 : i32
    %69 = tpu.dynamic_rotate %68 by %c17_i32 dim 1 : vector<16x512xf32>, i32 -> vector<16x512xf32>
    %c0_27 = arith.constant 0 : index
    %c0_28 = arith.constant 0 : index
    %c0_29 = arith.constant 0 : index
    %70 = vector.load %arg1[%c0_27, %c0_28, %c0_29] : memref<9x1x512xf32, #tpu.memory_space<vmem>>, vector<1x1x512xf32>
    %71 = vector.shape_cast %70 : vector<1x1x512xf32> to vector<1x512xf32>
    %72 = vector.broadcast %71 : vector<1x512xf32> to vector<16x512xf32>
    %73 = arith.mulf %69, %72 : vector<16x512xf32>
    %c16_i32 = arith.constant 16 : i32
    %74 = tpu.dynamic_rotate %68 by %c16_i32 dim 1 : vector<16x512xf32>, i32 -> vector<16x512xf32>
    %c1 = arith.constant 1 : index
    %c0_30 = arith.constant 0 : index
    %c0_31 = arith.constant 0 : index
    %75 = vector.load %arg1[%c1, %c0_30, %c0_31] : memref<9x1x512xf32, #tpu.memory_space<vmem>>, vector<1x1x512xf32>
    %76 = vector.shape_cast %75 : vector<1x1x512xf32> to vector<1x512xf32>
    %77 = vector.broadcast %76 : vector<1x512xf32> to vector<16x512xf32>
    %78 = arith.mulf %74, %77 : vector<16x512xf32>
    %c15_i32 = arith.constant 15 : i32
    %79 = tpu.dynamic_rotate %68 by %c15_i32 dim 1 : vector<16x512xf32>, i32 -> vector<16x512xf32>
    %c2 = arith.constant 2 : index
    %c0_32 = arith.constant 0 : index
    %c0_33 = arith.constant 0 : index
    %80 = vector.load %arg1[%c2, %c0_32, %c0_33] : memref<9x1x512xf32, #tpu.memory_space<vmem>>, vector<1x1x512xf32>
    %81 = vector.shape_cast %80 : vector<1x1x512xf32> to vector<1x512xf32>
    %82 = vector.broadcast %81 : vector<1x512xf32> to vector<16x512xf32>
    %83 = arith.mulf %79, %82 : vector<16x512xf32>
    %c1_i32 = arith.constant 1 : i32
    %84 = tpu.dynamic_rotate %68 by %c1_i32 dim 1 : vector<16x512xf32>, i32 -> vector<16x512xf32>
    %c3 = arith.constant 3 : index
    %c0_34 = arith.constant 0 : index
    %c0_35 = arith.constant 0 : index
    %85 = vector.load %arg1[%c3, %c0_34, %c0_35] : memref<9x1x512xf32, #tpu.memory_space<vmem>>, vector<1x1x512xf32>
    %86 = vector.shape_cast %85 : vector<1x1x512xf32> to vector<1x512xf32>
    %87 = vector.broadcast %86 : vector<1x512xf32> to vector<16x512xf32>
    %88 = arith.mulf %84, %87 : vector<16x512xf32>
    %c4 = arith.constant 4 : index
    %c0_36 = arith.constant 0 : index
    %c0_37 = arith.constant 0 : index
    %89 = vector.load %arg1[%c4, %c0_36, %c0_37] : memref<9x1x512xf32, #tpu.memory_space<vmem>>, vector<1x1x512xf32>
    %90 = vector.shape_cast %89 : vector<1x1x512xf32> to vector<1x512xf32>
    %91 = vector.broadcast %90 : vector<1x512xf32> to vector<16x512xf32>
    %92 = arith.mulf %68, %91 : vector<16x512xf32>
    %c511_i32 = arith.constant 511 : i32
    %93 = tpu.dynamic_rotate %68 by %c511_i32 dim 1 : vector<16x512xf32>, i32 -> vector<16x512xf32>
    %c5 = arith.constant 5 : index
    %c0_38 = arith.constant 0 : index
    %c0_39 = arith.constant 0 : index
    %94 = vector.load %arg1[%c5, %c0_38, %c0_39] : memref<9x1x512xf32, #tpu.memory_space<vmem>>, vector<1x1x512xf32>
    %95 = vector.shape_cast %94 : vector<1x1x512xf32> to vector<1x512xf32>
    %96 = vector.broadcast %95 : vector<1x512xf32> to vector<16x512xf32>
    %97 = arith.mulf %93, %96 : vector<16x512xf32>
    %c497_i32 = arith.constant 497 : i32
    %98 = tpu.dynamic_rotate %68 by %c497_i32 dim 1 : vector<16x512xf32>, i32 -> vector<16x512xf32>
    %c6 = arith.constant 6 : index
    %c0_40 = arith.constant 0 : index
    %c0_41 = arith.constant 0 : index
    %99 = vector.load %arg1[%c6, %c0_40, %c0_41] : memref<9x1x512xf32, #tpu.memory_space<vmem>>, vector<1x1x512xf32>
    %100 = vector.shape_cast %99 : vector<1x1x512xf32> to vector<1x512xf32>
    %101 = vector.broadcast %100 : vector<1x512xf32> to vector<16x512xf32>
    %102 = arith.mulf %98, %101 : vector<16x512xf32>
    %c496_i32 = arith.constant 496 : i32
    %103 = tpu.dynamic_rotate %68 by %c496_i32 dim 1 : vector<16x512xf32>, i32 -> vector<16x512xf32>
    %c7 = arith.constant 7 : index
    %c0_42 = arith.constant 0 : index
    %c0_43 = arith.constant 0 : index
    %104 = vector.load %arg1[%c7, %c0_42, %c0_43] : memref<9x1x512xf32, #tpu.memory_space<vmem>>, vector<1x1x512xf32>
    %105 = vector.shape_cast %104 : vector<1x1x512xf32> to vector<1x512xf32>
    %106 = vector.broadcast %105 : vector<1x512xf32> to vector<16x512xf32>
    %107 = arith.mulf %103, %106 : vector<16x512xf32>
    %c495_i32 = arith.constant 495 : i32
    %108 = tpu.dynamic_rotate %68 by %c495_i32 dim 1 : vector<16x512xf32>, i32 -> vector<16x512xf32>
    %c8 = arith.constant 8 : index
    %c0_44 = arith.constant 0 : index
    %c0_45 = arith.constant 0 : index
    %109 = vector.load %arg1[%c8, %c0_44, %c0_45] : memref<9x1x512xf32, #tpu.memory_space<vmem>>, vector<1x1x512xf32>
    %110 = vector.shape_cast %109 : vector<1x1x512xf32> to vector<1x512xf32>
    %111 = vector.broadcast %110 : vector<1x512xf32> to vector<16x512xf32>
    %112 = arith.mulf %108, %111 : vector<16x512xf32>
    %c0_46 = arith.constant 0 : index
    %c0_47 = arith.constant 0 : index
    %113 = vector.load %arg7[%c0_46, %c0_47] : memref<4x144xf32, #tpu.memory_space<vmem>>, vector<4x144xf32>
    %114 = arith.truncf %113 : vector<4x144xf32> to vector<4x144xbf16>
    %115 = tpu.concatenate %73, %78, %83, %88, %92, %97, %102, %107, %112 in 0 : vector<16x512xf32>, vector<16x512xf32>, vector<16x512xf32>, vector<16x512xf32>, vector<16x512xf32>, vector<16x512xf32>, vector<16x512xf32>, vector<16x512xf32>, vector<16x512xf32> -> vector<144x512xf32>
    %116 = arith.truncf %115 : vector<144x512xf32> to vector<144x512xbf16>
    %cst_48 = arith.constant dense<0.000000e+00> : vector<4x512xf32>
    %117 = tpu.matmul %114, %116, %cst_48 {dimension_numbers = #tpu.dot_dimension_numbers<[1], [0], [0], [1], [0, 0, 1, 1], [], []>} : vector<4x144xbf16>, vector<144x512xbf16>, vector<4x512xf32> -> vector<4x512xf32>
    %c0_49 = arith.constant 0 : index
    %c0_50 = arith.constant 0 : index
    %118 = vector.load %arg17[%c0_49, %c0_50] : memref<4x512xf32, #tpu.memory_space<vmem>>, vector<4x512xf32>
    tpu.vector_store %arg17[%c0_49, %c0_50], %117 {strides = array<i32>} : memref<4x512xf32, #tpu.memory_space<vmem>>, vector<4x512xf32>,
    %cst_51 = arith.constant dense<0.000000e+00> : vector<4xf32>
    %119 = vector.multi_reduction <add>, %117, %cst_51 [1] : vector<4x512xf32> to vector<4xf32>
    %120 = vector.shape_cast %119 : vector<4xf32> to vector<4x1xf32>
    %cst_52 = arith.constant 5.120000e+02 : f32
    %121 = vector.broadcast %cst_52 : f32 to vector<4x1xf32>
    %122 = arith.divf %120, %121 : vector<4x1xf32>
    %123 = vector.broadcast %122 : vector<4x1xf32> to vector<4x512xf32>
    %124 = arith.subf %117, %123 : vector<4x512xf32>
    %125 = arith.mulf %124, %124 : vector<4x512xf32>
    %cst_53 = arith.constant dense<0.000000e+00> : vector<4xf32>
    %126 = vector.multi_reduction <add>, %125, %cst_53 [1] : vector<4x512xf32> to vector<4xf32>
    %127 = vector.shape_cast %126 : vector<4xf32> to vector<4x1xf32>
    %cst_54 = arith.constant 5.120000e+02 : f32
    %128 = vector.broadcast %cst_54 : f32 to vector<4x1xf32>
    %129 = arith.divf %127, %128 : vector<4x1xf32>
    %130 = vector.broadcast %122 : vector<4x1xf32> to vector<4x512xf32>
    %131 = arith.subf %117, %130 : vector<4x512xf32>
    %cst_55 = arith.constant 9.99999974E-6 : f32
    %132 = vector.broadcast %cst_55 : f32 to vector<4x1xf32>
    %133 = arith.addf %129, %132 : vector<4x1xf32>
    %134 = math.rsqrt %133 : vector<4x1xf32>
    %135 = vector.broadcast %134 : vector<4x1xf32> to vector<4x512xf32>
    %136 = arith.mulf %131, %135 : vector<4x512xf32>
    %c0_56 = arith.constant 0 : index
    %c0_57 = arith.constant 0 : index
    %137 = vector.load %arg8[%c0_56, %c0_57] : memref<4x1xf32, #tpu.memory_space<vmem>>, vector<4x1xf32>
    %138 = vector.broadcast %137 : vector<4x1xf32> to vector<4x512xf32>
    %139 = arith.mulf %18, %138 : vector<4x512xf32>
    %c0_58 = arith.constant 0 : index
    %c0_59 = arith.constant 0 : index
    %140 = vector.load %arg9[%c0_58, %c0_59] : memref<4x1xf32, #tpu.memory_space<vmem>>, vector<4x1xf32>
    %141 = vector.broadcast %140 : vector<4x1xf32> to vector<4x512xf32>
    %142 = arith.addf %139, %141 : vector<4x512xf32>
    %cst_60 = arith.constant 0.000000e+00 : f32
    %143 = vector.broadcast %cst_60 : f32 to vector<4x512xf32>
    %144 = arith.cmpf ogt, %142, %143 : vector<4x512xf32>
    %cst_61 = arith.constant 0.000000e+00 : f32
    %145 = vector.broadcast %cst_61 : f32 to vector<4x512xf32>
    %146 = arith.minimumf %142, %145 : vector<4x512xf32>
    %147 = math.exp %146 : vector<4x512xf32>
    %cst_62 = arith.constant 1.000000e+00 : f32
    %148 = vector.broadcast %cst_62 : f32 to vector<4x512xf32>
    %149 = arith.subf %147, %148 : vector<4x512xf32>
    %150 = arith.select %144, %142, %149 : vector<4x512xi1>, vector<4x512xf32>
    %c0_63 = arith.constant 0 : index
    %c0_64 = arith.constant 0 : index
    %151 = vector.load %arg10[%c0_63, %c0_64] : memref<16x4xf32, #tpu.memory_space<vmem>>, vector<16x4xf32>
    %152 = arith.truncf %151 : vector<16x4xf32> to vector<16x4xbf16>
    %153 = arith.truncf %150 : vector<4x512xf32> to vector<4x512xbf16>
    %cst_65 = arith.constant dense<0.000000e+00> : vector<16x512xf32>
    %154 = tpu.matmul %152, %153, %cst_65 {dimension_numbers = #tpu.dot_dimension_numbers<[1], [0], [0], [1], [0, 0, 1, 1], [], []>} : vector<16x4xbf16>, vector<4x512xbf16>, vector<16x512xf32> -> vector<16x512xf32>
    %c0_66 = arith.constant 0 : index
    %c0_67 = arith.constant 0 : index
    %155 = vector.load %arg11[%c0_66, %c0_67] : memref<4x1xf32, #tpu.memory_space<vmem>>, vector<4x1xf32>
    %156 = vector.broadcast %155 : vector<4x1xf32> to vector<4x512xf32>
    %157 = arith.mulf %136, %156 : vector<4x512xf32>
    %c0_68 = arith.constant 0 : index
    %c0_69 = arith.constant 0 : index
    %158 = vector.load %arg12[%c0_68, %c0_69] : memref<4x1xf32, #tpu.memory_space<vmem>>, vector<4x1xf32>
    %159 = vector.broadcast %158 : vector<4x1xf32> to vector<4x512xf32>
    %160 = arith.addf %157, %159 : vector<4x512xf32>
    %cst_70 = arith.constant 0.000000e+00 : f32
    %161 = vector.broadcast %cst_70 : f32 to vector<4x512xf32>
    %162 = arith.cmpf ogt, %160, %161 : vector<4x512xf32>
    %cst_71 = arith.constant 0.000000e+00 : f32
    %163 = vector.broadcast %cst_71 : f32 to vector<4x512xf32>
    %164 = arith.minimumf %160, %163 : vector<4x512xf32>
    %165 = math.exp %164 : vector<4x512xf32>
    %cst_72 = arith.constant 1.000000e+00 : f32
    %166 = vector.broadcast %cst_72 : f32 to vector<4x512xf32>
    %167 = arith.subf %165, %166 : vector<4x512xf32>
    %168 = arith.select %162, %160, %167 : vector<4x512xi1>, vector<4x512xf32>
    %c0_73 = arith.constant 0 : index
    %c0_74 = arith.constant 0 : index
    %169 = vector.load %arg13[%c0_73, %c0_74] : memref<16x4xf32, #tpu.memory_space<vmem>>, vector<16x4xf32>
    %170 = arith.truncf %169 : vector<16x4xf32> to vector<16x4xbf16>
    %171 = arith.truncf %168 : vector<4x512xf32> to vector<4x512xbf16>
    %cst_75 = arith.constant dense<0.000000e+00> : vector<16x512xf32>
    %172 = tpu.matmul %170, %171, %cst_75 {dimension_numbers = #tpu.dot_dimension_numbers<[1], [0], [0], [1], [0, 0, 1, 1], [], []>} : vector<16x4xbf16>, vector<4x512xbf16>, vector<16x512xf32> -> vector<16x512xf32>
    %173 = arith.addf %154, %172 : vector<16x512xf32>
    %cst_76 = arith.constant dense<0.000000e+00> : vector<16xf32>
    %174 = vector.multi_reduction <add>, %173, %cst_76 [1] : vector<16x512xf32> to vector<16xf32>
    %175 = vector.shape_cast %174 : vector<16xf32> to vector<16x1xf32>
    %cst_77 = arith.constant 5.120000e+02 : f32
    %176 = vector.broadcast %cst_77 : f32 to vector<16x1xf32>
    %177 = arith.divf %175, %176 : vector<16x1xf32>
    %178 = vector.broadcast %177 : vector<16x1xf32> to vector<16x512xf32>
    %179 = arith.subf %173, %178 : vector<16x512xf32>
    %180 = arith.mulf %179, %179 : vector<16x512xf32>
    %cst_78 = arith.constant dense<0.000000e+00> : vector<16xf32>
    %181 = vector.multi_reduction <add>, %180, %cst_78 [1] : vector<16x512xf32> to vector<16xf32>
    %182 = vector.shape_cast %181 : vector<16xf32> to vector<16x1xf32>
    %cst_79 = arith.constant 5.120000e+02 : f32
    %183 = vector.broadcast %cst_79 : f32 to vector<16x1xf32>
    %184 = arith.divf %182, %183 : vector<16x1xf32>
    %185 = vector.broadcast %177 : vector<16x1xf32> to vector<16x512xf32>
    %186 = arith.subf %173, %185 : vector<16x512xf32>
    %cst_80 = arith.constant 9.99999974E-6 : f32
    %187 = vector.broadcast %cst_80 : f32 to vector<16x1xf32>
    %188 = arith.addf %184, %187 : vector<16x1xf32>
    %189 = math.rsqrt %188 : vector<16x1xf32>
    %190 = vector.broadcast %189 : vector<16x1xf32> to vector<16x512xf32>
    %191 = arith.mulf %186, %190 : vector<16x512xf32>
    %c0_81 = arith.constant 0 : index
    %c0_82 = arith.constant 0 : index
    %192 = vector.load %arg14[%c0_81, %c0_82] : memref<16x1xf32, #tpu.memory_space<vmem>>, vector<16x1xf32>
    %193 = vector.broadcast %192 : vector<16x1xf32> to vector<16x512xf32>
    %194 = arith.mulf %191, %193 : vector<16x512xf32>
    %c0_83 = arith.constant 0 : index
    %c0_84 = arith.constant 0 : index
    %195 = vector.load %arg15[%c0_83, %c0_84] : memref<16x1xf32, #tpu.memory_space<vmem>>, vector<16x1xf32>
    %196 = vector.broadcast %195 : vector<16x1xf32> to vector<16x512xf32>
    %197 = arith.addf %194, %196 : vector<16x512xf32>
    %cst_85 = arith.constant 0.000000e+00 : f32
    %198 = vector.broadcast %cst_85 : f32 to vector<16x512xf32>
    %199 = arith.cmpf ogt, %197, %198 : vector<16x512xf32>
    %cst_86 = arith.constant 0.000000e+00 : f32
    %200 = vector.broadcast %cst_86 : f32 to vector<16x512xf32>
    %201 = arith.minimumf %197, %200 : vector<16x512xf32>
    %202 = math.exp %201 : vector<16x512xf32>
    %cst_87 = arith.constant 1.000000e+00 : f32
    %203 = vector.broadcast %cst_87 : f32 to vector<16x512xf32>
    %204 = arith.subf %202, %203 : vector<16x512xf32>
    %205 = arith.select %199, %197, %204 : vector<16x512xi1>, vector<16x512xf32>
    %c17_i32_88 = arith.constant 17 : i32
    %206 = tpu.dynamic_rotate %205 by %c17_i32_88 dim 1 : vector<16x512xf32>, i32 -> vector<16x512xf32>
    %c0_89 = arith.constant 0 : index
    %c0_90 = arith.constant 0 : index
    %c0_91 = arith.constant 0 : index
    %207 = vector.load %arg1[%c0_89, %c0_90, %c0_91] : memref<9x1x512xf32, #tpu.memory_space<vmem>>, vector<1x1x512xf32>
    %208 = vector.shape_cast %207 : vector<1x1x512xf32> to vector<1x512xf32>
    %209 = vector.broadcast %208 : vector<1x512xf32> to vector<16x512xf32>
    %210 = arith.mulf %206, %209 : vector<16x512xf32>
    %c16_i32_92 = arith.constant 16 : i32
    %211 = tpu.dynamic_rotate %205 by %c16_i32_92 dim 1 : vector<16x512xf32>, i32 -> vector<16x512xf32>
    %c1_93 = arith.constant 1 : index
    %c0_94 = arith.constant 0 : index
    %c0_95 = arith.constant 0 : index
    %212 = vector.load %arg1[%c1_93, %c0_94, %c0_95] : memref<9x1x512xf32, #tpu.memory_space<vmem>>, vector<1x1x512xf32>
    %213 = vector.shape_cast %212 : vector<1x1x512xf32> to vector<1x512xf32>
    %214 = vector.broadcast %213 : vector<1x512xf32> to vector<16x512xf32>
    %215 = arith.mulf %211, %214 : vector<16x512xf32>
    %c15_i32_96 = arith.constant 15 : i32
    %216 = tpu.dynamic_rotate %205 by %c15_i32_96 dim 1 : vector<16x512xf32>, i32 -> vector<16x512xf32>
    %c2_97 = arith.constant 2 : index
    %c0_98 = arith.constant 0 : index
    %c0_99 = arith.constant 0 : index
    %217 = vector.load %arg1[%c2_97, %c0_98, %c0_99] : memref<9x1x512xf32, #tpu.memory_space<vmem>>, vector<1x1x512xf32>
    %218 = vector.shape_cast %217 : vector<1x1x512xf32> to vector<1x512xf32>
    %219 = vector.broadcast %218 : vector<1x512xf32> to vector<16x512xf32>
    %220 = arith.mulf %216, %219 : vector<16x512xf32>
    %c1_i32_100 = arith.constant 1 : i32
    %221 = tpu.dynamic_rotate %205 by %c1_i32_100 dim 1 : vector<16x512xf32>, i32 -> vector<16x512xf32>
    %c3_101 = arith.constant 3 : index
    %c0_102 = arith.constant 0 : index
    %c0_103 = arith.constant 0 : index
    %222 = vector.load %arg1[%c3_101, %c0_102, %c0_103] : memref<9x1x512xf32, #tpu.memory_space<vmem>>, vector<1x1x512xf32>
    %223 = vector.shape_cast %222 : vector<1x1x512xf32> to vector<1x512xf32>
    %224 = vector.broadcast %223 : vector<1x512xf32> to vector<16x512xf32>
    %225 = arith.mulf %221, %224 : vector<16x512xf32>
    %c4_104 = arith.constant 4 : index
    %c0_105 = arith.constant 0 : index
    %c0_106 = arith.constant 0 : index
    %226 = vector.load %arg1[%c4_104, %c0_105, %c0_106] : memref<9x1x512xf32, #tpu.memory_space<vmem>>, vector<1x1x512xf32>
    %227 = vector.shape_cast %226 : vector<1x1x512xf32> to vector<1x512xf32>
    %228 = vector.broadcast %227 : vector<1x512xf32> to vector<16x512xf32>
    %229 = arith.mulf %205, %228 : vector<16x512xf32>
    %c511_i32_107 = arith.constant 511 : i32
    %230 = tpu.dynamic_rotate %205 by %c511_i32_107 dim 1 : vector<16x512xf32>, i32 -> vector<16x512xf32>
    %c5_108 = arith.constant 5 : index
    %c0_109 = arith.constant 0 : index
    %c0_110 = arith.constant 0 : index
    %231 = vector.load %arg1[%c5_108, %c0_109, %c0_110] : memref<9x1x512xf32, #tpu.memory_space<vmem>>, vector<1x1x512xf32>
    %232 = vector.shape_cast %231 : vector<1x1x512xf32> to vector<1x512xf32>
    %233 = vector.broadcast %232 : vector<1x512xf32> to vector<16x512xf32>
    %234 = arith.mulf %230, %233 : vector<16x512xf32>
    %c497_i32_111 = arith.constant 497 : i32
    %235 = tpu.dynamic_rotate %205 by %c497_i32_111 dim 1 : vector<16x512xf32>, i32 -> vector<16x512xf32>
    %c6_112 = arith.constant 6 : index
    %c0_113 = arith.constant 0 : index
    %c0_114 = arith.constant 0 : index
    %236 = vector.load %arg1[%c6_112, %c0_113, %c0_114] : memref<9x1x512xf32, #tpu.memory_space<vmem>>, vector<1x1x512xf32>
    %237 = vector.shape_cast %236 : vector<1x1x512xf32> to vector<1x512xf32>
    %238 = vector.broadcast %237 : vector<1x512xf32> to vector<16x512xf32>
    %239 = arith.mulf %235, %238 : vector<16x512xf32>
    %c496_i32_115 = arith.constant 496 : i32
    %240 = tpu.dynamic_rotate %205 by %c496_i32_115 dim 1 : vector<16x512xf32>, i32 -> vector<16x512xf32>
    %c7_116 = arith.constant 7 : index
    %c0_117 = arith.constant 0 : index
    %c0_118 = arith.constant 0 : index
    %241 = vector.load %arg1[%c7_116, %c0_117, %c0_118] : memref<9x1x512xf32, #tpu.memory_space<vmem>>, vector<1x1x512xf32>
    %242 = vector.shape_cast %241 : vector<1x1x512xf32> to vector<1x512xf32>
    %243 = vector.broadcast %242 : vector<1x512xf32> to vector<16x512xf32>
    %244 = arith.mulf %240, %243 : vector<16x512xf32>
    %c495_i32_119 = arith.constant 495 : i32
    %245 = tpu.dynamic_rotate %205 by %c495_i32_119 dim 1 : vector<16x512xf32>, i32 -> vector<16x512xf32>
    %c8_120 = arith.constant 8 : index
    %c0_121 = arith.constant 0 : index
    %c0_122 = arith.constant 0 : index
    %246 = vector.load %arg1[%c8_120, %c0_121, %c0_122] : memref<9x1x512xf32, #tpu.memory_space<vmem>>, vector<1x1x512xf32>
    %247 = vector.shape_cast %246 : vector<1x1x512xf32> to vector<1x512xf32>
    %248 = vector.broadcast %247 : vector<1x512xf32> to vector<16x512xf32>
    %249 = arith.mulf %245, %248 : vector<16x512xf32>
    %c0_123 = arith.constant 0 : index
    %c0_124 = arith.constant 0 : index
    %250 = vector.load %arg16[%c0_123, %c0_124] : memref<4x144xf32, #tpu.memory_space<vmem>>, vector<4x144xf32>
    %251 = arith.truncf %250 : vector<4x144xf32> to vector<4x144xbf16>
    %252 = tpu.concatenate %210, %215, %220, %225, %229, %234, %239, %244, %249 in 0 : vector<16x512xf32>, vector<16x512xf32>, vector<16x512xf32>, vector<16x512xf32>, vector<16x512xf32>, vector<16x512xf32>, vector<16x512xf32>, vector<16x512xf32>, vector<16x512xf32> -> vector<144x512xf32>
    %253 = arith.truncf %252 : vector<144x512xf32> to vector<144x512xbf16>
    %cst_125 = arith.constant dense<0.000000e+00> : vector<4x512xf32>
    %254 = tpu.matmul %251, %253, %cst_125 {dimension_numbers = #tpu.dot_dimension_numbers<[1], [0], [0], [1], [0, 0, 1, 1], [], []>} : vector<4x144xbf16>, vector<144x512xbf16>, vector<4x512xf32> -> vector<4x512xf32>
    %c0_126 = arith.constant 0 : index
    %c0_127 = arith.constant 0 : index
    %255 = vector.load %arg18[%c0_126, %c0_127] : memref<4x512xf32, #tpu.memory_space<vmem>>, vector<4x512xf32>
    tpu.vector_store %arg18[%c0_126, %c0_127], %254 {strides = array<i32>} : memref<4x512xf32, #tpu.memory_space<vmem>>, vector<4x512xf32>,
    return
  }
}

</mosaic_0001>

<llo_original>
// kernel: tpu_custom_call.1
$region0: #{tpu_custom_call.1}
  #allocation0 [shape = 'u32[]', space=smem, size = 0x4, offset = 0x4, fixed_abs, tag = 'smem constant byte address 0x4 - core index']
  #allocation1 [shape = 'u32[144,128]{1,0:T(1,128)}', space=vmem, size = 0x12000, scoped, tag = 'internal scratch']
  %s0 = inlined_call_operand.vmem [shape: f32[4,512], index: 0, kind: input, shape index: {}]
  %s1 = inlined_call_operand.vmem [shape: f32[9,1,512], index: 1, kind: input, shape index: {}]
  %s2 = inlined_call_operand.vmem [shape: f32[4,1], index: 2, kind: input, shape index: {}]
  %s3 = inlined_call_operand.vmem [shape: f32[4,1], index: 3, kind: input, shape index: {}]
  %s4 = inlined_call_operand.vmem [shape: f32[16,4], index: 4, kind: input, shape index: {}]
  %s5 = inlined_call_operand.vmem [shape: f32[16,1], index: 5, kind: input, shape index: {}]
  %s6 = inlined_call_operand.vmem [shape: f32[16,1], index: 6, kind: input, shape index: {}]
  %s7 = inlined_call_operand.vmem [shape: f32[4,144], index: 7, kind: input, shape index: {}]
  %s8 = inlined_call_operand.vmem [shape: f32[4,1], index: 8, kind: input, shape index: {}]
  %s9 = inlined_call_operand.vmem [shape: f32[4,1], index: 9, kind: input, shape index: {}]
  %s10 = inlined_call_operand.vmem [shape: f32[16,4], index: 10, kind: input, shape index: {}]
  %s11 = inlined_call_operand.vmem [shape: f32[4,1], index: 11, kind: input, shape index: {}]
  %s12 = inlined_call_operand.vmem [shape: f32[4,1], index: 12, kind: input, shape index: {}]
  %s13 = inlined_call_operand.vmem [shape: f32[16,4], index: 13, kind: input, shape index: {}]
  %s14 = inlined_call_operand.vmem [shape: f32[16,1], index: 14, kind: input, shape index: {}]
  %s15 = inlined_call_operand.vmem [shape: f32[16,1], index: 15, kind: input, shape index: {}]
  %s16 = inlined_call_operand.vmem [shape: f32[4,144], index: 16, kind: input, shape index: {}]
  %s17 = inlined_call_operand.hbm [shape: f32[4,512], index: 17, kind: output, shape index: {0}]
  %s18 = inlined_call_operand.hbm [shape: f32[4,512], index: 18, kind: output, shape index: {1}]
  %19 = xla_tuple %s17, %s18
  %s20 = sld [smem:[#allocation0]]
  $region86: #{tpu_custom_call.1} parent=0
    _
  %s22 = ssub.s32 1, %s20
  %s23 = scalar_select 0, %s22, %s20
  $region1: #{tpu_custom_call.1} parent=0
    #allocation2 [shape = 'u8[8192]{0}', space=vmem, size = 0x2000, scoped, tag = 'output window, operand 0, single buffered']
    #allocation3 [shape = 's32[1]{0}', space=sflag, size = 0x4, scoped, tag = 'scoped memory for tpu_custom_call.1']
    #allocation4 [shape = 'u8[8192]{0}', space=vmem, size = 0x2000, scoped, tag = 'output window, operand 1, single buffered']
    #allocation5 [shape = 's32[1]{0}', space=sflag, size = 0x4, scoped, tag = 'scoped memory for tpu_custom_call.1']
    %24 = vsyncpa [#allocation3], 0
    %25 = vsyncpa [#allocation5], 0
    // Predicated region
    $region2: #{tpu_custom_call.1} parent=1 // pred_check
      _
    $region3: #{tpu_custom_call.1} parent=1 // pred_check_branch
      %27 = sbr.rel (0) target = $region5
    $region4: #{tpu_custom_call.1} parent=1 // pred_region
      _
    $region5: #{tpu_custom_call.1} parent=1 // pred_fallthru
      _
    // Predicated region
    $region6: #{tpu_custom_call.1} parent=1 // pred_check
      _
    $region7: #{tpu_custom_call.1} parent=1 // pred_check_branch
      %29 = sbr.rel (0) target = $region9
    $region8: #{tpu_custom_call.1} parent=1 // pred_region
      _
    $region9: #{tpu_custom_call.1} parent=1 // pred_fallthru
      _
    // Predicated region
    $region10: #{tpu_custom_call.1} parent=1 // pred_check
      _
    $region11: #{tpu_custom_call.1} parent=1 // pred_check_branch
      %31 = sbr.rel (0) target = $region13
    $region12: #{tpu_custom_call.1} parent=1 // pred_region
      _
    $region13: #{tpu_custom_call.1} parent=1 // pred_fallthru
      _
    // Predicated region
    $region14: #{tpu_custom_call.1} parent=1 // pred_check
      _
    $region15: #{tpu_custom_call.1} parent=1 // pred_check_branch
      %33 = sbr.rel (0) target = $region17
    $region16: #{tpu_custom_call.1} parent=1 // pred_region
      _
    $region17: #{tpu_custom_call.1} parent=1 // pred_fallthru
      _
    // Predicated region
    $region18: #{tpu_custom_call.1} parent=1 // pred_check
      _
    $region19: #{tpu_custom_call.1} parent=1 // pred_check_branch
      %35 = sbr.rel (0) target = $region21
    $region20: #{tpu_custom_call.1} parent=1 // pred_region
      _
    $region21: #{tpu_custom_call.1} parent=1 // pred_fallthru
      _
    // Predicated region
    $region22: #{tpu_custom_call.1} parent=1 // pred_check
      _
    $region23: #{tpu_custom_call.1} parent=1 // pred_check_branch
      %37 = sbr.rel (0) target = $region25
    $region24: #{tpu_custom_call.1} parent=1 // pred_region
      _
    $region25: #{tpu_custom_call.1} parent=1 // pred_fallthru
      _
    // Predicated region
    $region26: #{tpu_custom_call.1} parent=1 // pred_check
      _
    $region27: #{tpu_custom_call.1} parent=1 // pred_check_branch
      %39 = sbr.rel (0) target = $region29
    $region28: #{tpu_custom_call.1} parent=1 // pred_region
      _
    $region29: #{tpu_custom_call.1} parent=1 // pred_fallthru
      _
    // Predicated region
    $region30: #{tpu_custom_call.1} parent=1 // pred_check
      _
    $region31: #{tpu_custom_call.1} parent=1 // pred_check_branch
      %41 = sbr.rel (0) target = $region33
    $region32: #{tpu_custom_call.1} parent=1 // pred_region
      _
    $region33: #{tpu_custom_call.1} parent=1 // pred_fallthru
      _
    // Predicated region
    $region34: #{tpu_custom_call.1} parent=1 // pred_check
      _
    $region35: #{tpu_custom_call.1} parent=1 // pred_check_branch
      %43 = sbr.rel (0) target = $region37
    $region36: #{tpu_custom_call.1} parent=1 // pred_region
      _
    $region37: #{tpu_custom_call.1} parent=1 // pred_fallthru
      _
    // Predicated region
    $region38: #{tpu_custom_call.1} parent=1 // pred_check
      _
    $region39: #{tpu_custom_call.1} parent=1 // pred_check_branch
      %45 = sbr.rel (0) target = $region41
    $region40: #{tpu_custom_call.1} parent=1 // pred_region
      _
    $region41: #{tpu_custom_call.1} parent=1 // pred_fallthru
      _
    // Predicated region
    $region42: #{tpu_custom_call.1} parent=1 // pred_check
      _
    $region43: #{tpu_custom_call.1} parent=1 // pred_check_branch
      %47 = sbr.rel (0) target = $region45
    $region44: #{tpu_custom_call.1} parent=1 // pred_region
      _
    $region45: #{tpu_custom_call.1} parent=1 // pred_fallthru
      _
    // Predicated region
    $region46: #{tpu_custom_call.1} parent=1 // pred_check
      _
    $region47: #{tpu_custom_call.1} parent=1 // pred_check_branch
      %49 = sbr.rel (0) target = $region49
    $region48: #{tpu_custom_call.1} parent=1 // pred_region
      _
    $region49: #{tpu_custom_call.1} parent=1 // pred_fallthru
      _
    // Predicated region
    $region50: #{tpu_custom_call.1} parent=1 // pred_check
      _
    $region51: #{tpu_custom_call.1} parent=1 // pred_check_branch
      %51 = sbr.rel (0) target = $region53
    $region52: #{tpu_custom_call.1} parent=1 // pred_region
      _
    $region53: #{tpu_custom_call.1} parent=1 // pred_fallthru
      _
    // Predicated region
    $region54: #{tpu_custom_call.1} parent=1 // pred_check
      _
    $region55: #{tpu_custom_call.1} parent=1 // pred_check_branch
      %53 = sbr.rel (0) target = $region57
    $region56: #{tpu_custom_call.1} parent=1 // pred_region
      _
    $region57: #{tpu_custom_call.1} parent=1 // pred_fallthru
      _
    // Predicated region
    $region58: #{tpu_custom_call.1} parent=1 // pred_check
      _
    $region59: #{tpu_custom_call.1} parent=1 // pred_check_branch
      %55 = sbr.rel (0) target = $region61
    $region60: #{tpu_custom_call.1} parent=1 // pred_region
      _
    $region61: #{tpu_custom_call.1} parent=1 // pred_fallthru
      _
    // Predicated region
    $region62: #{tpu_custom_call.1} parent=1 // pred_check
      _
    $region63: #{tpu_custom_call.1} parent=1 // pred_check_branch
      %57 = sbr.rel (0) target = $region65
    $region64: #{tpu_custom_call.1} parent=1 // pred_region
      _
    $region65: #{tpu_custom_call.1} parent=1 // pred_fallthru
      _
    // Predicated region
    $region66: #{tpu_custom_call.1} parent=1 // pred_check
      _
    $region67: #{tpu_custom_call.1} parent=1 // pred_check_branch
      %59 = sbr.rel (0) target = $region69
    $region68: #{tpu_custom_call.1} parent=1 // pred_region
      _
    $region69: #{tpu_custom_call.1} parent=1 // pred_fallthru
      _
    %v61 = vld [vmem:[%s0] sm:$0xff]
    %v62 = vld [vmem:[%s0 + $0x8] sm:$0xff]
    %v65 = vcombine.high %v61, %v61
    %v66 = vcombine.high %v62, %v62
    %vm69 = vcmask 1043456
    %v70 = vsel %vm69, %v61, 0.0
    %v71 = vsel %vm69, %v65, 0.0
    %v72 = vadd.f32 %v70, %v71
    %v73 = vsel %vm69, %v62, 0.0
    %v74 = vadd.f32 %v72, %v73
    %v75 = vsel %vm69, %v66, 0.0
    %v76 = vadd.f32 %v74, %v75
    %77 = vadd.xlane.f32.xlu0 %v76
    %v78 = vpop.xlane.xlu0 %77
    %v79 = vrcp.pop 512.0
    %v80 = vmul.f32 %v78, %v79
    %v83 = vunpack.c.l.s4 839922192
    %v84 = vunpack.c.0.s8 %v83
    %v85 = vlaneseq
    %v86 = vshrl.u32 %v85, 7
    %v87 = vsub.s32 %v84, %v86
    %v88 = vrot.slane %v80, %v87
    %v90 = vsub.f32 %v61, %v88
    %v91 = vsub.f32 %v62, %v88
    %v92 = vmul.f32 %v90, %v90
    %v93 = vmul.f32 %v91, %v91
    %v96 = vcombine.high %v92, %v92
    %v97 = vcombine.high %v93, %v93
    %v100 = vsel %vm69, %v92, 0.0
    %v101 = vsel %vm69, %v96, 0.0
    %v102 = vadd.f32 %v100, %v101
    %v103 = vsel %vm69, %v93, 0.0
    %v104 = vadd.f32 %v102, %v103
    %v105 = vsel %vm69, %v97, 0.0
    %v106 = vadd.f32 %v104, %v105
    %107 = vadd.xlane.f32.xlu0 %v106
    %v108 = vpop.xlane.xlu0 %107
    %v109 = vmul.f32 %v108, %v79
    %v110 = vadd.f32 %v109, 1e-05
    %v111 = vrsqrt.pop %v110
    %v114 = vunpack.c.l.s4 839922192
    %v115 = vunpack.c.0.s8 %v114
    %v116 = vlaneseq
    %v117 = vshrl.u32 %v116, 7
    %v118 = vsub.s32 %v115, %v117
    %v119 = vrot.slane %v111, %v118
    %v121 = vmul.f32 %v90, %v119
    %v122 = vmul.f32 %v91, %v119
    %v123 = vld [vmem:[%s2] sm:$0xf]
    %125 = vset.pattern.permute.xlu0 0
    %126 = vperm.xlu0 %125, %v123
    %v127 = vpop.permute.xlu0 %126
    %v129 = vunpack.c.l.s4 839922192
    %v130 = vunpack.c.0.s8 %v129
    %v131 = vlaneseq
    %v132 = vshrl.u32 %v131, 7
    %v133 = vsub.s32 %v130, %v132
    %v134 = vrot.slane %v127, %v133
    %v136 = vmul.f32 %v121, %v134
    %v137 = vmul.f32 %v122, %v134
    %v138 = vld [vmem:[%s3] sm:$0xf]
    %140 = vset.pattern.permute.xlu0 0
    %141 = vperm.xlu0 %140, %v138
    %v142 = vpop.permute.xlu0 %141
    %v144 = vunpack.c.l.s4 839922192
    %v145 = vunpack.c.0.s8 %v144
    %v146 = vlaneseq
    %v147 = vshrl.u32 %v146, 7
    %v148 = vsub.s32 %v145, %v147
    %v149 = vrot.slane %v142, %v148
    %v151 = vadd.f32 %v136, %v149
    %v152 = vadd.f32 %v137, %v149
    %vm153 = vcmp.gt.f32.partialorder %v151, 0.0
    %vm154 = vcmp.gt.f32.partialorder %v152, 0.0
    %v155 = vmin.f32 %v151, 0.0
    %v156 = vmin.f32 %v152, 0.0
    %v157 = vmul.f32 %v155, 1.442695
    %v158 = vpow.pop %v157
    %v159 = vmul.f32 %v156, 1.442695
    %v160 = vpow.pop %v159
    %v161 = vsub.f32 %v158, 1.0
    %v162 = vsub.f32 %v160, 1.0
    %v163 = vsel %vm153, %v151, %v161
    %v164 = vsel %vm154, %v152, %v162
    %v165 = vld [vmem:[%s4] sm:$0xff]
    %v166 = vld [vmem:[%s4 + $0x8] sm:$0xff]
    %v167 = vpack.c.bf16 %v166, %v165
    %v170 = vcombine.high %v163, %v163
    %v171 = vcombine.high %v164, %v164
    %v174 = vpack.c.bf16 %v163, %v163
    %v175 = vpack.c.bf16 %v170, %v170
    %v176 = vpack.c.bf16 %v164, %v164
    %v177 = vpack.c.bf16 %v171, %v171
    %vm178 = vcmask 31744
    %v180 = vsel %vm178, %v167, 0
    %vm182 = vcmask 1041408
    %v184 = vsel %vm182, %v174, 0
    %v187 = vsel %vm182, %v175, 0
    %v190 = vsel %vm182, %v176, 0
    %v193 = vsel %vm182, %v177, 0
    %195 = vmatprep.subr.bf16.mxu0 0
    %196 = vmatpush1.bf16.msra.mxu0 0
    %197 = vmatprep.subr.bf16.mxu0 0
    %198 = vmatpush1.bf16.msra.mxu0 0
    %199 = vmatprep.subr.bf16.mxu0 0
    %200 = vmatpush1.bf16.msra.mxu0 0
    %201 = vmatprep.subr.bf16.mxu0 0
    %202 = vmatpush1.bf16.msra.mxu0 0
    %203 = vmatprep.subr.bf16.mxu0 0
    %204 = vmatpush1.bf16.msra.mxu0 0
    %205 = vmatprep.subr.bf16.mxu0 0
    %206 = vmatpush1.bf16.msra.mxu0 0
    %207 = vmatprep.subr.bf16.mxu0 0
    %208 = vmatpush1.bf16.msra.mxu0 0
    %209 = vmatprep.subr.bf16.mxu0 %v187
    %210 = vmatpush1.bf16.msra.mxu0 %v184
    %211 = vmatprep.subr.bf16.mxu0 0
    %212 = vmatpush2.bf16.msra.mxu0 0
    %213 = vmatprep.subr.bf16.mxu0 0
    %214 = vmatpush2.bf16.msra.mxu0 0
    %215 = vmatprep.subr.bf16.mxu0 0
    %216 = vmatpush2.bf16.msra.mxu0 0
    %217 = vmatprep.subr.bf16.mxu0 0
    %218 = vmatpush2.bf16.msra.mxu0 0
    %219 = vmatprep.subr.bf16.mxu0 0
    %220 = vmatpush2.bf16.msra.mxu0 0
    %221 = vmatprep.subr.bf16.mxu0 0
    %222 = vmatpush2.bf16.msra.mxu0 0
    %223 = vmatprep.subr.bf16.mxu0 0
    %224 = vmatpush2.bf16.msra.mxu0 0
    %225 = vmatprep.subr.bf16.mxu0 0
    %226 = vmatpush2.bf16.msra.mxu0 0
    %227 = vmatprep.mubr.bf16.mxu0 0
    %228 = vmatmul.mubr.bf16.gmra.mxu0 %v180
    %v229 = vpop.f32.mrf.mxu0
    %v230 = vadd.f32 0.0, %v229
    %v231 = vpop.f32.mrf.mxu0
    %v232 = vadd.f32 0.0, %v231
    %v233 = vpop.f32.mrf.mxu0
    %v234 = vadd.f32 0.0, %v233
    %v235 = vpop.f32.mrf.mxu0
    %v236 = vadd.f32 0.0, %v235
    %237 = vdwg.mxu0
    %238 = vmatprep.subr.bf16.mxu0 0
    %239 = vmatpush1.bf16.msra.mxu0 0
    %240 = vmatprep.subr.bf16.mxu0 0
    %241 = vmatpush1.bf16.msra.mxu0 0
    %242 = vmatprep.subr.bf16.mxu0 0
    %243 = vmatpush1.bf16.msra.mxu0 0
    %244 = vmatprep.subr.bf16.mxu0 0
    %245 = vmatpush1.bf16.msra.mxu0 0
    %246 = vmatprep.subr.bf16.mxu0 0
    %247 = vmatpush1.bf16.msra.mxu0 0
    %248 = vmatprep.subr.bf16.mxu0 0
    %249 = vmatpush1.bf16.msra.mxu0 0
    %250 = vmatprep.subr.bf16.mxu0 0
    %251 = vmatpush1.bf16.msra.mxu0 0
    %252 = vmatprep.subr.bf16.mxu0 %v193
    %253 = vmatpush1.bf16.msra.mxu0 %v190
    %254 = vmatprep.subr.bf16.mxu0 0
    %255 = vmatpush2.bf16.msra.mxu0 0
    %256 = vmatprep.subr.bf16.mxu0 0
    %257 = vmatpush2.bf16.msra.mxu0 0
    %258 = vmatprep.subr.bf16.mxu0 0
    %259 = vmatpush2.bf16.msra.mxu0 0
    %260 = vmatprep.subr.bf16.mxu0 0
    %261 = vmatpush2.bf16.msra.mxu0 0
    %262 = vmatprep.subr.bf16.mxu0 0
    %263 = vmatpush2.bf16.msra.mxu0 0
    %264 = vmatprep.subr.bf16.mxu0 0
    %265 = vmatpush2.bf16.msra.mxu0 0
    %266 = vmatprep.subr.bf16.mxu0 0
    %267 = vmatpush2.bf16.msra.mxu0 0
    %268 = vmatprep.subr.bf16.mxu0 0
    %269 = vmatpush2.bf16.msra.mxu0 0
    %270 = vmatprep.mubr.bf16.mxu0 0
    %271 = vmatmul.mubr.bf16.gmra.mxu0 %v180
    %v272 = vpop.f32.mrf.mxu0
    %v273 = vadd.f32 0.0, %v272
    %v274 = vpop.f32.mrf.mxu0
    %v275 = vadd.f32 0.0, %v274
    %v276 = vpop.f32.mrf.mxu0
    %v277 = vadd.f32 0.0, %v276
    %v278 = vpop.f32.mrf.mxu0
    %v279 = vadd.f32 0.0, %v278
    %280 = vdwg.mxu0
    %v281 = vadd.f32 %v230, %v232
    %v282 = vadd.f32 %v281, %v273
    %v283 = vadd.f32 %v282, %v275
    %284 = vadd.xlane.f32.xlu0 %v283
    %v285 = vpop.xlane.xlu0 %284
    %v286 = vadd.f32 %v234, %v236
    %v287 = vadd.f32 %v286, %v277
    %v288 = vadd.f32 %v287, %v279
    %289 = vadd.xlane.f32.xlu0 %v288
    %v290 = vpop.xlane.xlu0 %289
    %v291 = vmul.f32 %v285, %v79
    %v292 = vmul.f32 %v290, %v79
    %v293 = vsub.f32 %v230, %v291
    %v294 = vsub.f32 %v232, %v291
    %v295 = vsub.f32 %v273, %v291
    %v296 = vsub.f32 %v275, %v291
    %v297 = vsub.f32 %v234, %v292
    %v298 = vsub.f32 %v236, %v292
    %v299 = vsub.f32 %v277, %v292
    %v300 = vsub.f32 %v279, %v292
    %v301 = vmul.f32 %v293, %v293
    %v302 = vmul.f32 %v294, %v294
    %v303 = vmul.f32 %v295, %v295
    %v304 = vmul.f32 %v296, %v296
    %v305 = vmul.f32 %v297, %v297
    %v306 = vmul.f32 %v298, %v298
    %v307 = vmul.f32 %v299, %v299
    %v308 = vmul.f32 %v300, %v300
    %v309 = vadd.f32 %v301, %v302
    %v310 = vadd.f32 %v309, %v303
    %v311 = vadd.f32 %v310, %v304
    %312 = vadd.xlane.f32.xlu0 %v311
    %v313 = vpop.xlane.xlu0 %312
    %v314 = vadd.f32 %v305, %v306
    %v315 = vadd.f32 %v314, %v307
    %v316 = vadd.f32 %v315, %v308
    %317 = vadd.xlane.f32.xlu0 %v316
    %v318 = vpop.xlane.xlu0 %317
    %v319 = vmul.f32 %v313, %v79
    %v320 = vmul.f32 %v318, %v79
    %v321 = vadd.f32 %v319, 1e-05
    %v322 = vadd.f32 %v320, 1e-05
    %v323 = vrsqrt.pop %v321
    %v324 = vrsqrt.pop %v322
    %v325 = vmul.f32 %v293, %v323
    %v326 = vmul.f32 %v294, %v323
    %v327 = vmul.f32 %v295, %v323
    %v328 = vmul.f32 %v296, %v323
    %v329 = vmul.f32 %v297, %v324
    %v330 = vmul.f32 %v298, %v324
    %v331 = vmul.f32 %v299, %v324
    %v332 = vmul.f32 %v300, %v324
    %v333 = vld [vmem:[%s5] sm:$0xff]
    %v334 = vld [vmem:[%s5 + $0x8] sm:$0xff]
    %336 = vset.pattern.permute.xlu0 0
    %337 = vperm.xlu0 %336, %v333
    %v338 = vpop.permute.xlu0 %337
    %341 = vset.pattern.permute.xlu0 0
    %342 = vperm.xlu0 %341, %v334
    %v343 = vpop.permute.xlu0 %342
    %v345 = vmul.f32 %v325, %v338
    %v346 = vmul.f32 %v326, %v338
    %v347 = vmul.f32 %v327, %v338
    %v348 = vmul.f32 %v328, %v338
    %v349 = vmul.f32 %v329, %v343
    %v350 = vmul.f32 %v330, %v343
    %v351 = vmul.f32 %v331, %v343
    %v352 = vmul.f32 %v332, %v343
    %v353 = vld [vmem:[%s6] sm:$0xff]
    %v354 = vld [vmem:[%s6 + $0x8] sm:$0xff]
    %356 = vset.pattern.permute.xlu0 0
    %357 = vperm.xlu0 %356, %v353
    %v358 = vpop.permute.xlu0 %357
    %361 = vset.pattern.permute.xlu0 0
    %362 = vperm.xlu0 %361, %v354
    %v363 = vpop.permute.xlu0 %362
    %v365 = vadd.f32 %v345, %v358
    %v366 = vadd.f32 %v346, %v358
    %v367 = vadd.f32 %v347, %v358
    %v368 = vadd.f32 %v348, %v358
    %v369 = vadd.f32 %v349, %v363
    %v370 = vadd.f32 %v350, %v363
    %v371 = vadd.f32 %v351, %v363
    %v372 = vadd.f32 %v352, %v363
    %vm373 = vcmp.gt.f32.partialorder %v365, 0.0
    %vm374 = vcmp.gt.f32.partialorder %v366, 0.0
    %vm375 = vcmp.gt.f32.partialorder %v367, 0.0
    %vm376 = vcmp.gt.f32.partialorder %v368, 0.0
    %vm377 = vcmp.gt.f32.partialorder %v369, 0.0
    %vm378 = vcmp.gt.f32.partialorder %v370, 0.0
    %vm379 = vcmp.gt.f32.partialorder %v371, 0.0
    %vm380 = vcmp.gt.f32.partialorder %v372, 0.0
    %v381 = vmin.f32 %v365, 0.0
    %v382 = vmin.f32 %v366, 0.0
    %v383 = vmin.f32 %v367, 0.0
    %v384 = vmin.f32 %v368, 0.0
    %v385 = vmin.f32 %v369, 0.0
    %v386 = vmin.f32 %v370, 0.0
    %v387 = vmin.f32 %v371, 0.0
    %v388 = vmin.f32 %v372, 0.0
    %v389 = vmul.f32 %v381, 1.442695
    %v390 = vpow.pop %v389
    %v391 = vmul.f32 %v382, 1.442695
    %v392 = vpow.pop %v391
    %v393 = vmul.f32 %v383, 1.442695
    %v394 = vpow.pop %v393
    %v395 = vmul.f32 %v384, 1.442695
    %v396 = vpow.pop %v395
    %v397 = vmul.f32 %v385, 1.442695
    %v398 = vpow.pop %v397
    %v399 = vmul.f32 %v386, 1.442695
    %v400 = vpow.pop %v399
    %v401 = vmul.f32 %v387, 1.442695
    %v402 = vpow.pop %v401
    %v403 = vmul.f32 %v388, 1.442695
    %v404 = vpow.pop %v403
    %v405 = vsub.f32 %v390, 1.0
    %v406 = vsub.f32 %v392, 1.0
    %v407 = vsub.f32 %v394, 1.0
    %v408 = vsub.f32 %v396, 1.0
    %v409 = vsub.f32 %v398, 1.0
    %v410 = vsub.f32 %v400, 1.0
    %v411 = vsub.f32 %v402, 1.0
    %v412 = vsub.f32 %v404, 1.0
    %v413 = vsel %vm373, %v365, %v405
    %v414 = vsel %vm374, %v366, %v406
    %v415 = vsel %vm375, %v367, %v407
    %v416 = vsel %vm376, %v368, %v408
    %v417 = vsel %vm377, %v369, %v409
    %v418 = vsel %vm378, %v370, %v410
    %v419 = vsel %vm379, %v371, %v411
    %v420 = vsel %vm380, %v372, %v412
    %421 = vrot.lane.b32.xlu0 %v413, 17
    %v422 = vpop.permute.xlu0 %421
    %423 = vrot.lane.b32.xlu0 %v417, 17
    %v424 = vpop.permute.xlu0 %423
    %425 = vrot.lane.b32.xlu0 %v414, 17
    %v426 = vpop.permute.xlu0 %425
    %427 = vrot.lane.b32.xlu0 %v418, 17
    %v428 = vpop.permute.xlu0 %427
    %429 = vrot.lane.b32.xlu0 %v415, 17
    %v430 = vpop.permute.xlu0 %429
    %431 = vrot.lane.b32.xlu0 %v419, 17
    %v432 = vpop.permute.xlu0 %431
    %433 = vrot.lane.b32.xlu0 %v416, 17
    %v434 = vpop.permute.xlu0 %433
    %435 = vrot.lane.b32.xlu0 %v420, 17
    %v436 = vpop.permute.xlu0 %435
    %v437 = vlaneseq
    %v438 = vand.u32 %v437, 127
    %vm439 = vcmp.lt.s32.totalorder %v438, 17
    %v440 = vsel %vm439, %v430, %v434
    %v441 = vsel %vm439, %v432, %v436
    %v442 = vsel %vm439, %v426, %v430
    %v443 = vsel %vm439, %v428, %v432
    %v444 = vsel %vm439, %v422, %v426
    %v445 = vsel %vm439, %v424, %v428
    %v446 = vsel %vm439, %v434, %v422
    %v447 = vsel %vm439, %v436, %v424
    %v448 = vld [vmem:[%s1] sm:$0xf]
    %v450 = vlaneseq
    %v451 = vshrl.u32 %v450, 7
    %v452 = vsub.s32 0, %v451
    %v453 = vrot.slane %v448, %v452
    %v454 = vlaneseq
    %v455 = vshrl.u32 %v454, 7
    %v456 = vsub.s32 1, %v455
    %v457 = vrot.slane %v448, %v456
    %v458 = vlaneseq
    %v459 = vshrl.u32 %v458, 7
    %v460 = vsub.s32 2, %v459
    %v461 = vrot.slane %v448, %v460
    %v462 = vlaneseq
    %v463 = vshrl.u32 %v462, 7
    %v464 = vsub.s32 3, %v463
    %v465 = vrot.slane %v448, %v464
    %v470 = vmul.f32 %v446, %v453
    %v471 = vmul.f32 %v444, %v457
    %v472 = vmul.f32 %v442, %v461
    %v473 = vmul.f32 %v440, %v465
    %v474 = vmul.f32 %v447, %v453
    %v475 = vmul.f32 %v445, %v457
    %v476 = vmul.f32 %v443, %v461
    %v477 = vmul.f32 %v441, %v465
    %478 = vrot.lane.b32.xlu0 %v413, 16
    %v479 = vpop.permute.xlu0 %478
    %480 = vrot.lane.b32.xlu0 %v417, 16
    %v481 = vpop.permute.xlu0 %480
    %482 = vrot.lane.b32.xlu0 %v414, 16
    %v483 = vpop.permute.xlu0 %482
    %484 = vrot.lane.b32.xlu0 %v418, 16
    %v485 = vpop.permute.xlu0 %484
    %486 = vrot.lane.b32.xlu0 %v415, 16
    %v487 = vpop.permute.xlu0 %486
    %488 = vrot.lane.b32.xlu0 %v419, 16
    %v489 = vpop.permute.xlu0 %488
    %490 = vrot.lane.b32.xlu0 %v416, 16
    %v491 = vpop.permute.xlu0 %490
    %492 = vrot.lane.b32.xlu0 %v420, 16
    %v493 = vpop.permute.xlu0 %492
    %vm494 = vcmp.lt.s32.totalorder %v438, 16
    %v495 = vsel %vm494, %v487, %v491
    %v496 = vsel %vm494, %v489, %v493
    %v497 = vsel %vm494, %v483, %v487
    %v498 = vsel %vm494, %v485, %v489
    %v499 = vsel %vm494, %v479, %v483
    %v500 = vsel %vm494, %v481, %v485
    %v501 = vsel %vm494, %v491, %v479
    %v502 = vsel %vm494, %v493, %v481
    %s503 = scalar_lea.vmem %s1, 4
    %v504 = vld [vmem:[%s503] sm:$0xf]
    %v506 = vlaneseq
    %v507 = vshrl.u32 %v506, 7
    %v508 = vsub.s32 0, %v507
    %v509 = vrot.slane %v504, %v508
    %v510 = vlaneseq
    %v511 = vshrl.u32 %v510, 7
    %v512 = vsub.s32 1, %v511
    %v513 = vrot.slane %v504, %v512
    %v514 = vlaneseq
    %v515 = vshrl.u32 %v514, 7
    %v516 = vsub.s32 2, %v515
    %v517 = vrot.slane %v504, %v516
    %v518 = vlaneseq
    %v519 = vshrl.u32 %v518, 7
    %v520 = vsub.s32 3, %v519
    %v521 = vrot.slane %v504, %v520
    %v526 = vmul.f32 %v501, %v509
    %v527 = vmul.f32 %v499, %v513
    %v528 = vmul.f32 %v497, %v517
    %v529 = vmul.f32 %v495, %v521
    %v530 = vmul.f32 %v502, %v509
    %v531 = vmul.f32 %v500, %v513
    %v532 = vmul.f32 %v498, %v517
    %v533 = vmul.f32 %v496, %v521
    %534 = vrot.lane.b32.xlu0 %v413, 15
    %v535 = vpop.permute.xlu0 %534
    %536 = vrot.lane.b32.xlu0 %v417, 15
    %v537 = vpop.permute.xlu0 %536
    %538 = vrot.lane.b32.xlu0 %v414, 15
    %v539 = vpop.permute.xlu0 %538
    %540 = vrot.lane.b32.xlu0 %v418, 15
    %v541 = vpop.permute.xlu0 %540
    %542 = vrot.lane.b32.xlu0 %v415, 15
    %v543 = vpop.permute.xlu0 %542
    %544 = vrot.lane.b32.xlu0 %v419, 15
    %v545 = vpop.permute.xlu0 %544
    %546 = vrot.lane.b32.xlu0 %v416, 15
    %v547 = vpop.permute.xlu0 %546
    %548 = vrot.lane.b32.xlu0 %v420, 15
    %v549 = vpop.permute.xlu0 %548
    %vm550 = vcmp.lt.s32.totalorder %v438, 15
    %v551 = vsel %vm550, %v543, %v547
    %v552 = vsel %vm550, %v545, %v549
    %v553 = vsel %vm550, %v539, %v543
    %v554 = vsel %vm550, %v541, %v545
    %v555 = vsel %vm550, %v535, %v539
    %v556 = vsel %vm550, %v537, %v541
    %v557 = vsel %vm550, %v547, %v535
    %v558 = vsel %vm550, %v549, %v537
    %s559 = scalar_lea.vmem %s1, 8
    %v560 = vld [vmem:[%s559] sm:$0xf]
    %v562 = vlaneseq
    %v563 = vshrl.u32 %v562, 7
    %v564 = vsub.s32 0, %v563
    %v565 = vrot.slane %v560, %v564
    %v566 = vlaneseq
    %v567 = vshrl.u32 %v566, 7
    %v568 = vsub.s32 1, %v567
    %v569 = vrot.slane %v560, %v568
    %v570 = vlaneseq
    %v571 = vshrl.u32 %v570, 7
    %v572 = vsub.s32 2, %v571
    %v573 = vrot.slane %v560, %v572
    %v574 = vlaneseq
    %v575 = vshrl.u32 %v574, 7
    %v576 = vsub.s32 3, %v575
    %v577 = vrot.slane %v560, %v576
    %v582 = vmul.f32 %v557, %v565
    %v583 = vmul.f32 %v555, %v569
    %v584 = vmul.f32 %v553, %v573
    %v585 = vmul.f32 %v551, %v577
    %v586 = vmul.f32 %v558, %v565
    %v587 = vmul.f32 %v556, %v569
    %v588 = vmul.f32 %v554, %v573
    %v589 = vmul.f32 %v552, %v577
    %590 = vrot.lane.b32.xlu0 %v413, 1
    %v591 = vpop.permute.xlu0 %590
    %592 = vrot.lane.b32.xlu0 %v417, 1
    %v593 = vpop.permute.xlu0 %592
    %594 = vrot.lane.b32.xlu0 %v414, 1
    %v595 = vpop.permute.xlu0 %594
    %596 = vrot.lane.b32.xlu0 %v418, 1
    %v597 = vpop.permute.xlu0 %596
    %598 = vrot.lane.b32.xlu0 %v415, 1
    %v599 = vpop.permute.xlu0 %598
    %600 = vrot.lane.b32.xlu0 %v419, 1
    %v601 = vpop.permute.xlu0 %600
    %602 = vrot.lane.b32.xlu0 %v416, 1
    %v603 = vpop.permute.xlu0 %602
    %604 = vrot.lane.b32.xlu0 %v420, 1
    %v605 = vpop.permute.xlu0 %604
    %vm606 = vcmp.lt.s32.totalorder %v438, 1
    %v607 = vsel %vm606, %v599, %v603
    %v608 = vsel %vm606, %v601, %v605
    %v609 = vsel %vm606, %v595, %v599
    %v610 = vsel %vm606, %v597, %v601
    %v611 = vsel %vm606, %v591, %v595
    %v612 = vsel %vm606, %v593, %v597
    %v613 = vsel %vm606, %v603, %v591
    %v614 = vsel %vm606, %v605, %v593
    %s615 = scalar_lea.vmem %s1, 12
    %v616 = vld [vmem:[%s615] sm:$0xf]
    %v618 = vlaneseq
    %v619 = vshrl.u32 %v618, 7
    %v620 = vsub.s32 0, %v619
    %v621 = vrot.slane %v616, %v620
    %v622 = vlaneseq
    %v623 = vshrl.u32 %v622, 7
    %v624 = vsub.s32 1, %v623
    %v625 = vrot.slane %v616, %v624
    %v626 = vlaneseq
    %v627 = vshrl.u32 %v626, 7
    %v628 = vsub.s32 2, %v627
    %v629 = vrot.slane %v616, %v628
    %v630 = vlaneseq
    %v631 = vshrl.u32 %v630, 7
    %v632 = vsub.s32 3, %v631
    %v633 = vrot.slane %v616, %v632
    %v638 = vmul.f32 %v613, %v621
    %v639 = vmul.f32 %v611, %v625
    %v640 = vmul.f32 %v609, %v629
    %v641 = vmul.f32 %v607, %v633
    %v642 = vmul.f32 %v614, %v621
    %v643 = vmul.f32 %v612, %v625
    %v644 = vmul.f32 %v610, %v629
    %v645 = vmul.f32 %v608, %v633
    %s646 = scalar_lea.vmem %s1, 16
    %v647 = vld [vmem:[%s646] sm:$0xf]
    %v649 = vlaneseq
    %v650 = vshrl.u32 %v649, 7
    %v651 = vsub.s32 0, %v650
    %v652 = vrot.slane %v647, %v651
    %v653 = vlaneseq
    %v654 = vshrl.u32 %v653, 7
    %v655 = vsub.s32 1, %v654
    %v656 = vrot.slane %v647, %v655
    %v657 = vlaneseq
    %v658 = vshrl.u32 %v657, 7
    %v659 = vsub.s32 2, %v658
    %v660 = vrot.slane %v647, %v659
    %v661 = vlaneseq
    %v662 = vshrl.u32 %v661, 7
    %v663 = vsub.s32 3, %v662
    %v664 = vrot.slane %v647, %v663
    %v669 = vmul.f32 %v413, %v652
    %v670 = vmul.f32 %v414, %v656
    %v671 = vmul.f32 %v415, %v660
    %v672 = vmul.f32 %v416, %v664
    %v673 = vmul.f32 %v417, %v652
    %v674 = vmul.f32 %v418, %v656
    %v675 = vmul.f32 %v419, %v660
    %v676 = vmul.f32 %v420, %v664
    %677 = vrot.lane.b32.xlu0 %v413, 127
    %v678 = vpop.permute.xlu0 %677
    %679 = vrot.lane.b32.xlu0 %v417, 127
    %v680 = vpop.permute.xlu0 %679
    %681 = vrot.lane.b32.xlu0 %v414, 127
    %v682 = vpop.permute.xlu0 %681
    %683 = vrot.lane.b32.xlu0 %v418, 127
    %v684 = vpop.permute.xlu0 %683
    %685 = vrot.lane.b32.xlu0 %v415, 127
    %v686 = vpop.permute.xlu0 %685
    %687 = vrot.lane.b32.xlu0 %v419, 127
    %v688 = vpop.permute.xlu0 %687
    %689 = vrot.lane.b32.xlu0 %v416, 127
    %v690 = vpop.permute.xlu0 %689
    %691 = vrot.lane.b32.xlu0 %v420, 127
    %v692 = vpop.permute.xlu0 %691
    %vm693 = vcmp.lt.s32.totalorder %v438, 127
    %v694 = vsel %vm693, %v686, %v690
    %v695 = vsel %vm693, %v688, %v692
    %v696 = vsel %vm693, %v682, %v686
    %v697 = vsel %vm693, %v684, %v688
    %v698 = vsel %vm693, %v678, %v682
    %v699 = vsel %vm693, %v680, %v684
    %v700 = vsel %vm693, %v690, %v678
    %v701 = vsel %vm693, %v692, %v680
    %s702 = scalar_lea.vmem %s1, 20
    %v703 = vld [vmem:[%s702] sm:$0xf]
    %v705 = vlaneseq
    %v706 = vshrl.u32 %v705, 7
    %v707 = vsub.s32 0, %v706
    %v708 = vrot.slane %v703, %v707
    %v709 = vlaneseq
    %v710 = vshrl.u32 %v709, 7
    %v711 = vsub.s32 1, %v710
    %v712 = vrot.slane %v703, %v711
    %v713 = vlaneseq
    %v714 = vshrl.u32 %v713, 7
    %v715 = vsub.s32 2, %v714
    %v716 = vrot.slane %v703, %v715
    %v717 = vlaneseq
    %v718 = vshrl.u32 %v717, 7
    %v719 = vsub.s32 3, %v718
    %v720 = vrot.slane %v703, %v719
    %v725 = vmul.f32 %v698, %v708
    %v726 = vmul.f32 %v696, %v712
    %v727 = vmul.f32 %v694, %v716
    %v728 = vmul.f32 %v700, %v720
    %v729 = vmul.f32 %v699, %v708
    %v730 = vmul.f32 %v697, %v712
    %v731 = vmul.f32 %v695, %v716
    %v732 = vmul.f32 %v701, %v720
    %733 = vrot.lane.b32.xlu0 %v413, 113
    %v734 = vpop.permute.xlu0 %733
    %735 = vrot.lane.b32.xlu0 %v417, 113
    %v736 = vpop.permute.xlu0 %735
    %737 = vrot.lane.b32.xlu0 %v414, 113
    %v738 = vpop.permute.xlu0 %737
    %739 = vrot.lane.b32.xlu0 %v418, 113
    %v740 = vpop.permute.xlu0 %739
    %741 = vrot.lane.b32.xlu0 %v415, 113
    %v742 = vpop.permute.xlu0 %741
    %743 = vrot.lane.b32.xlu0 %v419, 113
    %v744 = vpop.permute.xlu0 %743
    %745 = vrot.lane.b32.xlu0 %v416, 113
    %v746 = vpop.permute.xlu0 %745
    %747 = vrot.lane.b32.xlu0 %v420, 113
    %v748 = vpop.permute.xlu0 %747
    %vm749 = vcmp.lt.s32.totalorder %v438, 113
    %v750 = vsel %vm749, %v742, %v746
    %v751 = vsel %vm749, %v744, %v748
    %v752 = vsel %vm749, %v738, %v742
    %v753 = vsel %vm749, %v740, %v744
    %v754 = vsel %vm749, %v734, %v738
    %v755 = vsel %vm749, %v736, %v740
    %v756 = vsel %vm749, %v746, %v734
    %v757 = vsel %vm749, %v748, %v736
    %s758 = scalar_lea.vmem %s1, 24
    %v759 = vld [vmem:[%s758] sm:$0xf]
    %v761 = vlaneseq
    %v762 = vshrl.u32 %v761, 7
    %v763 = vsub.s32 0, %v762
    %v764 = vrot.slane %v759, %v763
    %v765 = vlaneseq
    %v766 = vshrl.u32 %v765, 7
    %v767 = vsub.s32 1, %v766
    %v768 = vrot.slane %v759, %v767
    %v769 = vlaneseq
    %v770 = vshrl.u32 %v769, 7
    %v771 = vsub.s32 2, %v770
    %v772 = vrot.slane %v759, %v771
    %v773 = vlaneseq
    %v774 = vshrl.u32 %v773, 7
    %v775 = vsub.s32 3, %v774
    %v776 = vrot.slane %v759, %v775
    %v781 = vmul.f32 %v754, %v764
    %v782 = vmul.f32 %v752, %v768
    %v783 = vmul.f32 %v750, %v772
    %v784 = vmul.f32 %v756, %v776
    %v785 = vmul.f32 %v755, %v764
    %v786 = vmul.f32 %v753, %v768
    %v787 = vmul.f32 %v751, %v772
    %v788 = vmul.f32 %v757, %v776
    %789 = vrot.lane.b32.xlu0 %v413, 112
    %v790 = vpop.permute.xlu0 %789
    %791 = vrot.lane.b32.xlu0 %v417, 112
    %v792 = vpop.permute.xlu0 %791
    %793 = vrot.lane.b32.xlu0 %v414, 112
    %v794 = vpop.permute.xlu0 %793
    %795 = vrot.lane.b32.xlu0 %v418, 112
    %v796 = vpop.permute.xlu0 %795
    %797 = vrot.lane.b32.xlu0 %v415, 112
    %v798 = vpop.permute.xlu0 %797
    %799 = vrot.lane.b32.xlu0 %v419, 112
    %v800 = vpop.permute.xlu0 %799
    %801 = vrot.lane.b32.xlu0 %v416, 112
    %v802 = vpop.permute.xlu0 %801
    %803 = vrot.lane.b32.xlu0 %v420, 112
    %v804 = vpop.permute.xlu0 %803
    %vm805 = vcmp.lt.s32.totalorder %v438, 112
    %v806 = vsel %vm805, %v798, %v802
    %v807 = vsel %vm805, %v800, %v804
    %v808 = vsel %vm805, %v794, %v798
    %v809 = vsel %vm805, %v796, %v800
    %v810 = vsel %vm805, %v790, %v794
    %v811 = vsel %vm805, %v792, %v796
    %v812 = vsel %vm805, %v802, %v790
    %v813 = vsel %vm805, %v804, %v792
    %s814 = scalar_lea.vmem %s1, 28
    %v815 = vld [vmem:[%s814] sm:$0xf]
    %v817 = vlaneseq
    %v818 = vshrl.u32 %v817, 7
    %v819 = vsub.s32 0, %v818
    %v820 = vrot.slane %v815, %v819
    %v821 = vlaneseq
    %v822 = vshrl.u32 %v821, 7
    %v823 = vsub.s32 1, %v822
    %v824 = vrot.slane %v815, %v823
    %v825 = vlaneseq
    %v826 = vshrl.u32 %v825, 7
    %v827 = vsub.s32 2, %v826
    %v828 = vrot.slane %v815, %v827
    %v829 = vlaneseq
    %v830 = vshrl.u32 %v829, 7
    %v831 = vsub.s32 3, %v830
    %v832 = vrot.slane %v815, %v831
    %v837 = vmul.f32 %v810, %v820
    %v838 = vmul.f32 %v808, %v824
    %v839 = vmul.f32 %v806, %v828
    %v840 = vmul.f32 %v812, %v832
    %v841 = vmul.f32 %v811, %v820
    %v842 = vmul.f32 %v809, %v824
    %v843 = vmul.f32 %v807, %v828
    %v844 = vmul.f32 %v813, %v832
    %845 = vrot.lane.b32.xlu0 %v413, 111
    %v846 = vpop.permute.xlu0 %845
    %847 = vrot.lane.b32.xlu0 %v417, 111
    %v848 = vpop.permute.xlu0 %847
    %849 = vrot.lane.b32.xlu0 %v414, 111
    %v850 = vpop.permute.xlu0 %849
    %851 = vrot.lane.b32.xlu0 %v418, 111
    %v852 = vpop.permute.xlu0 %851
    %853 = vrot.lane.b32.xlu0 %v415, 111
    %v854 = vpop.permute.xlu0 %853
    %855 = vrot.lane.b32.xlu0 %v419, 111
    %v856 = vpop.permute.xlu0 %855
    %857 = vrot.lane.b32.xlu0 %v416, 111
    %v858 = vpop.permute.xlu0 %857
    %859 = vrot.lane.b32.xlu0 %v420, 111
    %v860 = vpop.permute.xlu0 %859
    %vm861 = vcmp.lt.s32.totalorder %v438, 111
    %v862 = vsel %vm861, %v854, %v858
    %v863 = vsel %vm861, %v856, %v860
    %v864 = vsel %vm861, %v850, %v854
    %v865 = vsel %vm861, %v852, %v856
    %v866 = vsel %vm861, %v846, %v850
    %v867 = vsel %vm861, %v848, %v852
    %v868 = vsel %vm861, %v858, %v846
    %v869 = vsel %vm861, %v860, %v848
    %s870 = scalar_lea.vmem %s1, 32
    %v871 = vld [vmem:[%s870] sm:$0xf]
    %v873 = vlaneseq
    %v874 = vshrl.u32 %v873, 7
    %v875 = vsub.s32 0, %v874
    %v876 = vrot.slane %v871, %v875
    %v877 = vlaneseq
    %v878 = vshrl.u32 %v877, 7
    %v879 = vsub.s32 1, %v878
    %v880 = vrot.slane %v871, %v879
    %v881 = vlaneseq
    %v882 = vshrl.u32 %v881, 7
    %v883 = vsub.s32 2, %v882
    %v884 = vrot.slane %v871, %v883
    %v885 = vlaneseq
    %v886 = vshrl.u32 %v885, 7
    %v887 = vsub.s32 3, %v886
    %v888 = vrot.slane %v871, %v887
    %v893 = vmul.f32 %v866, %v876
    %v894 = vmul.f32 %v864, %v880
    %v895 = vmul.f32 %v862, %v884
    %v896 = vmul.f32 %v868, %v888
    %v897 = vmul.f32 %v867, %v876
    %v898 = vmul.f32 %v865, %v880
    %v899 = vmul.f32 %v863, %v884
    %v900 = vmul.f32 %v869, %v888
    %v901 = vld [vmem:[%s7] sm:$0xff]
    %v903 = vcombine.high %v901, %v901
    %v905 = vpack.c.bf16 %v901, %v901
    %v906 = vpack.c.bf16 %v903, %v903
    %v907 = vpack.c.bf16 %v474, %v470
    %v908 = vpack.c.bf16 %v475, %v471
    %v909 = vpack.c.bf16 %v476, %v472
    %v910 = vpack.c.bf16 %v477, %v473
    %v911 = vpack.c.bf16 %v530, %v526
    %v912 = vpack.c.bf16 %v531, %v527
    %v913 = vpack.c.bf16 %v532, %v528
    %v914 = vpack.c.bf16 %v533, %v529
    %v915 = vpack.c.bf16 %v586, %v582
    %v916 = vpack.c.bf16 %v587, %v583
    %v917 = vpack.c.bf16 %v588, %v584
    %v918 = vpack.c.bf16 %v589, %v585
    %v919 = vpack.c.bf16 %v642, %v638
    %v920 = vpack.c.bf16 %v643, %v639
    %v921 = vpack.c.bf16 %v644, %v640
    %v922 = vpack.c.bf16 %v645, %v641
    %v923 = vpack.c.bf16 %v673, %v669
    %v924 = vpack.c.bf16 %v674, %v670
    %v925 = vpack.c.bf16 %v675, %v671
    %v926 = vpack.c.bf16 %v676, %v672
    %v927 = vpack.c.bf16 %v729, %v725
    %v928 = vpack.c.bf16 %v730, %v726
    %v929 = vpack.c.bf16 %v731, %v727
    %v930 = vpack.c.bf16 %v732, %v728
    %v931 = vpack.c.bf16 %v785, %v781
    %v932 = vpack.c.bf16 %v786, %v782
    %v933 = vpack.c.bf16 %v787, %v783
    %v934 = vpack.c.bf16 %v788, %v784
    %v935 = vpack.c.bf16 %v841, %v837
    %v936 = vpack.c.bf16 %v842, %v838
    %v937 = vpack.c.bf16 %v843, %v839
    %v938 = vpack.c.bf16 %v844, %v840
    %v939 = vpack.c.bf16 %v897, %v893
    %v940 = vpack.c.bf16 %v898, %v894
    %v941 = vpack.c.bf16 %v899, %v895
    %v942 = vpack.c.bf16 %v900, %v896
    %vm943 = vcmask 130048
    %v945 = vsel %vm943, %v906, 0
    %947 = vmatprep.subr.bf16.mxu0 %v936
    %948 = vmatpush1.bf16.msra.mxu0 %v935
    %949 = vmatprep.subr.bf16.mxu0 %v932
    %950 = vmatpush1.bf16.msra.mxu0 %v931
    %951 = vmatprep.subr.bf16.mxu0 %v928
    %952 = vmatpush1.bf16.msra.mxu0 %v927
    %953 = vmatprep.subr.bf16.mxu0 %v924
    %954 = vmatpush1.bf16.msra.mxu0 %v923
    %955 = vmatprep.subr.bf16.mxu0 %v920
    %956 = vmatpush1.bf16.msra.mxu0 %v919
    %957 = vmatprep.subr.bf16.mxu0 %v916
    %958 = vmatpush1.bf16.msra.mxu0 %v915
    %959 = vmatprep.subr.bf16.mxu0 %v912
    %960 = vmatpush1.bf16.msra.mxu0 %v911
    %961 = vmatprep.subr.bf16.mxu0 %v908
    %962 = vmatpush1.bf16.msra.mxu0 %v907
    %963 = vmatprep.subr.bf16.mxu0 0
    %964 = vmatpush2.bf16.msra.mxu0 0
    %965 = vmatprep.subr.bf16.mxu0 0
    %966 = vmatpush2.bf16.msra.mxu0 0
    %967 = vmatprep.subr.bf16.mxu0 0
    %968 = vmatpush2.bf16.msra.mxu0 0
    %969 = vmatprep.subr.bf16.mxu0 0
    %970 = vmatpush2.bf16.msra.mxu0 0
    %971 = vmatprep.subr.bf16.mxu0 0
    %972 = vmatpush2.bf16.msra.mxu0 0
    %973 = vmatprep.subr.bf16.mxu0 0
    %974 = vmatpush2.bf16.msra.mxu0 0
    %975 = vmatprep.subr.bf16.mxu0 0
    %976 = vmatpush2.bf16.msra.mxu0 0
    %977 = vmatprep.subr.bf16.mxu0 %v940
    %978 = vmatpush2.bf16.msra.mxu0 %v939
    %979 = vmatprep.mubr.bf16.mxu0 %v945
    %980 = vmatmul.mubr.bf16.gmra.mxu0 %v905
    %v981 = vpop.f32.mrf.mxu0
    %v982 = vadd.f32 0.0, %v981
    %v983 = vpop.f32.mrf.mxu0
    %v984 = vadd.f32 0.0, %v983
    %v985 = vpop.f32.mrf.mxu0
    %v986 = vpop.f32.mrf.mxu0
    %987 = vdwg.mxu0
    %988 = vmatprep.subr.bf16.mxu0 %v938
    %989 = vmatpush1.bf16.msra.mxu0 %v937
    %990 = vmatprep.subr.bf16.mxu0 %v934
    %991 = vmatpush1.bf16.msra.mxu0 %v933
    %992 = vmatprep.subr.bf16.mxu0 %v930
    %993 = vmatpush1.bf16.msra.mxu0 %v929
    %994 = vmatprep.subr.bf16.mxu0 %v926
    %995 = vmatpush1.bf16.msra.mxu0 %v925
    %996 = vmatprep.subr.bf16.mxu0 %v922
    %997 = vmatpush1.bf16.msra.mxu0 %v921
    %998 = vmatprep.subr.bf16.mxu0 %v918
    %999 = vmatpush1.bf16.msra.mxu0 %v917
    %1000 = vmatprep.subr.bf16.mxu0 %v914
    %1001 = vmatpush1.bf16.msra.mxu0 %v913
    %1002 = vmatprep.subr.bf16.mxu0 %v910
    %1003 = vmatpush1.bf16.msra.mxu0 %v909
    %1004 = vmatprep.subr.bf16.mxu0 0
    %1005 = vmatpush2.bf16.msra.mxu0 0
    %1006 = vmatprep.subr.bf16.mxu0 0
    %1007 = vmatpush2.bf16.msra.mxu0 0
    %1008 = vmatprep.subr.bf16.mxu0 0
    %1009 = vmatpush2.bf16.msra.mxu0 0
    %1010 = vmatprep.subr.bf16.mxu0 0
    %1011 = vmatpush2.bf16.msra.mxu0 0
    %1012 = vmatprep.subr.bf16.mxu0 0
    %1013 = vmatpush2.bf16.msra.mxu0 0
    %1014 = vmatprep.subr.bf16.mxu0 0
    %1015 = vmatpush2.bf16.msra.mxu0 0
    %1016 = vmatprep.subr.bf16.mxu0 0
    %1017 = vmatpush2.bf16.msra.mxu0 0
    %1018 = vmatprep.subr.bf16.mxu0 %v942
    %1019 = vmatpush2.bf16.msra.mxu0 %v941
    %1020 = vmatprep.mubr.bf16.mxu0 %v945
    %1021 = vmatmul.mubr.bf16.gmra.mxu0 %v905
    %v1022 = vpop.f32.mrf.mxu0
    %v1023 = vadd.f32 0.0, %v1022
    %v1024 = vpop.f32.mrf.mxu0
    %v1025 = vadd.f32 0.0, %v1024
    %v1026 = vpop.f32.mrf.mxu0
    %v1027 = vpop.f32.mrf.mxu0
    %1028 = vdwg.mxu0
    %v1033 = vcombine.low %v982, %v984
    %v1034 = vcombine.low %v1023, %v1025
    %1037 = vst [vmem:[#allocation2] sm:$0xff] %v1033
    %1038 = vst [vmem:[#allocation2 + $0x8] sm:$0xff] %v1034
    %v1039 = vsel %vm69, %v982, 0.0
    %v1040 = vsel %vm69, %v984, 0.0
    %v1041 = vadd.f32 %v1039, %v1040
    %v1042 = vsel %vm69, %v1023, 0.0
    %v1043 = vadd.f32 %v1041, %v1042
    %v1044 = vsel %vm69, %v1025, 0.0
    %v1045 = vadd.f32 %v1043, %v1044
    %1046 = vadd.xlane.f32.xlu0 %v1045
    %v1047 = vpop.xlane.xlu0 %1046
    %v1048 = vmul.f32 %v1047, %v79
    %v1049 = vsub.f32 %v982, %v1048
    %v1050 = vsub.f32 %v984, %v1048
    %v1051 = vsub.f32 %v1023, %v1048
    %v1052 = vsub.f32 %v1025, %v1048
    %v1053 = vmul.f32 %v1049, %v1049
    %v1054 = vmul.f32 %v1050, %v1050
    %v1055 = vmul.f32 %v1051, %v1051
    %v1056 = vmul.f32 %v1052, %v1052
    %v1057 = vsel %vm69, %v1053, 0.0
    %v1058 = vsel %vm69, %v1054, 0.0
    %v1059 = vadd.f32 %v1057, %v1058
    %v1060 = vsel %vm69, %v1055, 0.0
    %v1061 = vadd.f32 %v1059, %v1060
    %v1062 = vsel %vm69, %v1056, 0.0
    %v1063 = vadd.f32 %v1061, %v1062
    %1064 = vadd.xlane.f32.xlu0 %v1063
    %v1065 = vpop.xlane.xlu0 %1064
    %v1066 = vmul.f32 %v1065, %v79
    %v1067 = vadd.f32 %v1066, 1e-05
    %v1068 = vrsqrt.pop %v1067
    %v1069 = vmul.f32 %v1049, %v1068
    %v1070 = vmul.f32 %v1050, %v1068
    %v1071 = vmul.f32 %v1051, %v1068
    %v1072 = vmul.f32 %v1052, %v1068
    %v1073 = vld [vmem:[%s8] sm:$0xf]
    %1075 = vset.pattern.permute.xlu0 0
    %1076 = vperm.xlu0 %1075, %v1073
    %v1077 = vpop.permute.xlu0 %1076
    %v1079 = vunpack.c.l.s4 839922192
    %v1080 = vunpack.c.0.s8 %v1079
    %v1081 = vlaneseq
    %v1082 = vshrl.u32 %v1081, 7
    %v1083 = vsub.s32 %v1080, %v1082
    %v1084 = vrot.slane %v1077, %v1083
    %v1086 = vmul.f32 %v121, %v1084
    %v1087 = vmul.f32 %v122, %v1084
    %v1088 = vld [vmem:[%s9] sm:$0xf]
    %1090 = vset.pattern.permute.xlu0 0
    %1091 = vperm.xlu0 %1090, %v1088
    %v1092 = vpop.permute.xlu0 %1091
    %v1094 = vunpack.c.l.s4 839922192
    %v1095 = vunpack.c.0.s8 %v1094
    %v1096 = vlaneseq
    %v1097 = vshrl.u32 %v1096, 7
    %v1098 = vsub.s32 %v1095, %v1097
    %v1099 = vrot.slane %v1092, %v1098
    %v1101 = vadd.f32 %v1086, %v1099
    %v1102 = vadd.f32 %v1087, %v1099
    %vm1103 = vcmp.gt.f32.partialorder %v1101, 0.0
    %vm1104 = vcmp.gt.f32.partialorder %v1102, 0.0
    %v1105 = vmin.f32 %v1101, 0.0
    %v1106 = vmin.f32 %v1102, 0.0
    %v1107 = vmul.f32 %v1105, 1.442695
    %v1108 = vpow.pop %v1107
    %v1109 = vmul.f32 %v1106, 1.442695
    %v1110 = vpow.pop %v1109
    %v1111 = vsub.f32 %v1108, 1.0
    %v1112 = vsub.f32 %v1110, 1.0
    %v1113 = vsel %vm1103, %v1101, %v1111
    %v1114 = vsel %vm1104, %v1102, %v1112
    %v1115 = vld [vmem:[%s10] sm:$0xff]
    %v1116 = vld [vmem:[%s10 + $0x8] sm:$0xff]
    %v1117 = vpack.c.bf16 %v1116, %v1115
    %v1120 = vcombine.high %v1113, %v1113
    %v1121 = vcombine.high %v1114, %v1114
    %v1124 = vpack.c.bf16 %v1113, %v1113
    %v1125 = vpack.c.bf16 %v1120, %v1120
    %v1126 = vpack.c.bf16 %v1114, %v1114
    %v1127 = vpack.c.bf16 %v1121, %v1121
    %v1128 = vld [vmem:[%s11] sm:$0xf]
    %1130 = vset.pattern.permute.xlu0 0
    %1131 = vperm.xlu0 %1130, %v1128
    %v1132 = vpop.permute.xlu0 %1131
    %v1134 = vmul.f32 %v1069, %v1132
    %v1135 = vmul.f32 %v1070, %v1132
    %v1136 = vmul.f32 %v1071, %v1132
    %v1137 = vmul.f32 %v1072, %v1132
    %v1138 = vld [vmem:[%s12] sm:$0xf]
    %1140 = vset.pattern.permute.xlu0 0
    %1141 = vperm.xlu0 %1140, %v1138
    %v1142 = vpop.permute.xlu0 %1141
    %v1144 = vadd.f32 %v1134, %v1142
    %v1145 = vadd.f32 %v1135, %v1142
    %v1146 = vadd.f32 %v1136, %v1142
    %v1147 = vadd.f32 %v1137, %v1142
    %vm1148 = vcmp.gt.f32.partialorder %v1144, 0.0
    %vm1149 = vcmp.gt.f32.partialorder %v1145, 0.0
    %vm1150 = vcmp.gt.f32.partialorder %v1146, 0.0
    %vm1151 = vcmp.gt.f32.partialorder %v1147, 0.0
    %v1152 = vmin.f32 %v1144, 0.0
    %v1153 = vmin.f32 %v1145, 0.0
    %v1154 = vmin.f32 %v1146, 0.0
    %v1155 = vmin.f32 %v1147, 0.0
    %v1156 = vmul.f32 %v1152, 1.442695
    %v1157 = vpow.pop %v1156
    %v1158 = vmul.f32 %v1153, 1.442695
    %v1159 = vpow.pop %v1158
    %v1160 = vmul.f32 %v1154, 1.442695
    %v1161 = vpow.pop %v1160
    %v1162 = vmul.f32 %v1155, 1.442695
    %v1163 = vpow.pop %v1162
    %v1164 = vsub.f32 %v1157, 1.0
    %v1165 = vsub.f32 %v1159, 1.0
    %v1166 = vsub.f32 %v1161, 1.0
    %v1167 = vsub.f32 %v1163, 1.0
    %v1168 = vsel %vm1148, %v1144, %v1164
    %v1169 = vsel %vm1149, %v1145, %v1165
    %v1170 = vsel %vm1150, %v1146, %v1166
    %v1171 = vsel %vm1151, %v1147, %v1167
    %v1172 = vld [vmem:[%s13] sm:$0xff]
    %v1173 = vld [vmem:[%s13 + $0x8] sm:$0xff]
    %v1174 = vpack.c.bf16 %v1173, %v1172
    %v1175 = vpack.c.bf16 %v1168, %v1168
    %v1176 = vpack.c.bf16 %v1169, %v1169
    %v1177 = vpack.c.bf16 %v1170, %v1170
    %v1178 = vpack.c.bf16 %v1171, %v1171
    %v1180 = vsel %vm178, %v1174, 0
    %v1183 = vsel %vm182, %v1175, 0
    %v1186 = vsel %vm182, %v1176, 0
    %v1189 = vsel %vm182, %v1177, 0
    %v1192 = vsel %vm182, %v1178, 0
    %1194 = vmatprep.subr.bf16.mxu0 0
    %1195 = vmatpush1.bf16.msra.mxu0 0
    %1196 = vmatprep.subr.bf16.mxu0 0
    %1197 = vmatpush1.bf16.msra.mxu0 0
    %1198 = vmatprep.subr.bf16.mxu0 0
    %1199 = vmatpush1.bf16.msra.mxu0 0
    %1200 = vmatprep.subr.bf16.mxu0 0
    %1201 = vmatpush1.bf16.msra.mxu0 0
    %1202 = vmatprep.subr.bf16.mxu0 0
    %1203 = vmatpush1.bf16.msra.mxu0 0
    %1204 = vmatprep.subr.bf16.mxu0 0
    %1205 = vmatpush1.bf16.msra.mxu0 0
    %1206 = vmatprep.subr.bf16.mxu0 0
    %1207 = vmatpush1.bf16.msra.mxu0 0
    %1208 = vmatprep.subr.bf16.mxu0 %v1186
    %1209 = vmatpush1.bf16.msra.mxu0 %v1183
    %1210 = vmatprep.subr.bf16.mxu0 0
    %1211 = vmatpush2.bf16.msra.mxu0 0
    %1212 = vmatprep.subr.bf16.mxu0 0
    %1213 = vmatpush2.bf16.msra.mxu0 0
    %1214 = vmatprep.subr.bf16.mxu0 0
    %1215 = vmatpush2.bf16.msra.mxu0 0
    %1216 = vmatprep.subr.bf16.mxu0 0
    %1217 = vmatpush2.bf16.msra.mxu0 0
    %1218 = vmatprep.subr.bf16.mxu0 0
    %1219 = vmatpush2.bf16.msra.mxu0 0
    %1220 = vmatprep.subr.bf16.mxu0 0
    %1221 = vmatpush2.bf16.msra.mxu0 0
    %1222 = vmatprep.subr.bf16.mxu0 0
    %1223 = vmatpush2.bf16.msra.mxu0 0
    %1224 = vmatprep.subr.bf16.mxu0 0
    %1225 = vmatpush2.bf16.msra.mxu0 0
    %1226 = vmatprep.mubr.bf16.mxu0 0
    %1227 = vmatmul.mubr.bf16.gmra.mxu0 %v1180
    %v1228 = vpop.f32.mrf.mxu0
    %v1229 = vadd.f32 0.0, %v1228
    %v1230 = vpop.f32.mrf.mxu0
    %v1231 = vadd.f32 0.0, %v1230
    %v1232 = vpop.f32.mrf.mxu0
    %v1233 = vadd.f32 0.0, %v1232
    %v1234 = vpop.f32.mrf.mxu0
    %v1235 = vadd.f32 0.0, %v1234
    %1236 = vdwg.mxu0
    %1237 = vmatprep.subr.bf16.mxu0 0
    %1238 = vmatpush1.bf16.msra.mxu0 0
    %1239 = vmatprep.subr.bf16.mxu0 0
    %1240 = vmatpush1.bf16.msra.mxu0 0
    %1241 = vmatprep.subr.bf16.mxu0 0
    %1242 = vmatpush1.bf16.msra.mxu0 0
    %1243 = vmatprep.subr.bf16.mxu0 0
    %1244 = vmatpush1.bf16.msra.mxu0 0
    %1245 = vmatprep.subr.bf16.mxu0 0
    %1246 = vmatpush1.bf16.msra.mxu0 0
    %1247 = vmatprep.subr.bf16.mxu0 0
    %1248 = vmatpush1.bf16.msra.mxu0 0
    %1249 = vmatprep.subr.bf16.mxu0 0
    %1250 = vmatpush1.bf16.msra.mxu0 0
    %1251 = vmatprep.subr.bf16.mxu0 %v1192
    %1252 = vmatpush1.bf16.msra.mxu0 %v1189
    %1253 = vmatprep.subr.bf16.mxu0 0
    %1254 = vmatpush2.bf16.msra.mxu0 0
    %1255 = vmatprep.subr.bf16.mxu0 0
    %1256 = vmatpush2.bf16.msra.mxu0 0
    %1257 = vmatprep.subr.bf16.mxu0 0
    %1258 = vmatpush2.bf16.msra.mxu0 0
    %1259 = vmatprep.subr.bf16.mxu0 0
    %1260 = vmatpush2.bf16.msra.mxu0 0
    %1261 = vmatprep.subr.bf16.mxu0 0
    %1262 = vmatpush2.bf16.msra.mxu0 0
    %1263 = vmatprep.subr.bf16.mxu0 0
    %1264 = vmatpush2.bf16.msra.mxu0 0
    %1265 = vmatprep.subr.bf16.mxu0 0
    %1266 = vmatpush2.bf16.msra.mxu0 0
    %1267 = vmatprep.subr.bf16.mxu0 0
    %1268 = vmatpush2.bf16.msra.mxu0 0
    %1269 = vmatprep.mubr.bf16.mxu0 0
    %1270 = vmatmul.mubr.bf16.gmra.mxu0 %v1180
    %v1271 = vpop.f32.mrf.mxu0
    %v1272 = vadd.f32 0.0, %v1271
    %v1273 = vpop.f32.mrf.mxu0
    %v1274 = vadd.f32 0.0, %v1273
    %v1275 = vpop.f32.mrf.mxu0
    %v1276 = vadd.f32 0.0, %v1275
    %v1277 = vpop.f32.mrf.mxu0
    %v1278 = vadd.f32 0.0, %v1277
    %1279 = vdwg.mxu0
    %v1281 = vsel %vm178, %v1117, 0
    %v1284 = vsel %vm182, %v1124, 0
    %v1287 = vsel %vm182, %v1125, 0
    %v1290 = vsel %vm182, %v1126, 0
    %v1293 = vsel %vm182, %v1127, 0
    %1295 = vmatprep.subr.bf16.mxu0 0
    %1296 = vmatpush1.bf16.msra.mxu0 0
    %1297 = vmatprep.subr.bf16.mxu0 0
    %1298 = vmatpush1.bf16.msra.mxu0 0
    %1299 = vmatprep.subr.bf16.mxu0 0
    %1300 = vmatpush1.bf16.msra.mxu0 0
    %1301 = vmatprep.subr.bf16.mxu0 0
    %1302 = vmatpush1.bf16.msra.mxu0 0
    %1303 = vmatprep.subr.bf16.mxu0 0
    %1304 = vmatpush1.bf16.msra.mxu0 0
    %1305 = vmatprep.subr.bf16.mxu0 0
    %1306 = vmatpush1.bf16.msra.mxu0 0
    %1307 = vmatprep.subr.bf16.mxu0 0
    %1308 = vmatpush1.bf16.msra.mxu0 0
    %1309 = vmatprep.subr.bf16.mxu0 %v1287
    %1310 = vmatpush1.bf16.msra.mxu0 %v1284
    %1311 = vmatprep.subr.bf16.mxu0 0
    %1312 = vmatpush2.bf16.msra.mxu0 0
    %1313 = vmatprep.subr.bf16.mxu0 0
    %1314 = vmatpush2.bf16.msra.mxu0 0
    %1315 = vmatprep.subr.bf16.mxu0 0
    %1316 = vmatpush2.bf16.msra.mxu0 0
    %1317 = vmatprep.subr.bf16.mxu0 0
    %1318 = vmatpush2.bf16.msra.mxu0 0
    %1319 = vmatprep.subr.bf16.mxu0 0
    %1320 = vmatpush2.bf16.msra.mxu0 0
    %1321 = vmatprep.subr.bf16.mxu0 0
    %1322 = vmatpush2.bf16.msra.mxu0 0
    %1323 = vmatprep.subr.bf16.mxu0 0
    %1324 = vmatpush2.bf16.msra.mxu0 0
    %1325 = vmatprep.subr.bf16.mxu0 0
    %1326 = vmatpush2.bf16.msra.mxu0 0
    %1327 = vmatprep.mubr.bf16.mxu0 0
    %1328 = vmatmul.mubr.bf16.gmra.mxu0 %v1281
    %v1329 = vpop.f32.mrf.mxu0
    %v1330 = vadd.f32 %v1229, %v1329
    %v1331 = vpop.f32.mrf.mxu0
    %v1332 = vadd.f32 %v1231, %v1331
    %v1333 = vpop.f32.mrf.mxu0
    %v1334 = vadd.f32 %v1233, %v1333
    %v1335 = vpop.f32.mrf.mxu0
    %v1336 = vadd.f32 %v1235, %v1335
    %1337 = vdwg.mxu0
    %1338 = vmatprep.subr.bf16.mxu0 0
    %1339 = vmatpush1.bf16.msra.mxu0 0
    %1340 = vmatprep.subr.bf16.mxu0 0
    %1341 = vmatpush1.bf16.msra.mxu0 0
    %1342 = vmatprep.subr.bf16.mxu0 0
    %1343 = vmatpush1.bf16.msra.mxu0 0
    %1344 = vmatprep.subr.bf16.mxu0 0
    %1345 = vmatpush1.bf16.msra.mxu0 0
    %1346 = vmatprep.subr.bf16.mxu0 0
    %1347 = vmatpush1.bf16.msra.mxu0 0
    %1348 = vmatprep.subr.bf16.mxu0 0
    %1349 = vmatpush1.bf16.msra.mxu0 0
    %1350 = vmatprep.subr.bf16.mxu0 0
    %1351 = vmatpush1.bf16.msra.mxu0 0
    %1352 = vmatprep.subr.bf16.mxu0 %v1293
    %1353 = vmatpush1.bf16.msra.mxu0 %v1290
    %1354 = vmatprep.subr.bf16.mxu0 0
    %1355 = vmatpush2.bf16.msra.mxu0 0
    %1356 = vmatprep.subr.bf16.mxu0 0
    %1357 = vmatpush2.bf16.msra.mxu0 0
    %1358 = vmatprep.subr.bf16.mxu0 0
    %1359 = vmatpush2.bf16.msra.mxu0 0
    %1360 = vmatprep.subr.bf16.mxu0 0
    %1361 = vmatpush2.bf16.msra.mxu0 0
    %1362 = vmatprep.subr.bf16.mxu0 0
    %1363 = vmatpush2.bf16.msra.mxu0 0
    %1364 = vmatprep.subr.bf16.mxu0 0
    %1365 = vmatpush2.bf16.msra.mxu0 0
    %1366 = vmatprep.subr.bf16.mxu0 0
    %1367 = vmatpush2.bf16.msra.mxu0 0
    %1368 = vmatprep.subr.bf16.mxu0 0
    %1369 = vmatpush2.bf16.msra.mxu0 0
    %1370 = vmatprep.mubr.bf16.mxu0 0
    %1371 = vmatmul.mubr.bf16.gmra.mxu0 %v1281
    %v1372 = vpop.f32.mrf.mxu0
    %v1373 = vadd.f32 %v1272, %v1372
    %v1374 = vpop.f32.mrf.mxu0
    %v1375 = vadd.f32 %v1274, %v1374
    %v1376 = vpop.f32.mrf.mxu0
    %v1377 = vadd.f32 %v1276, %v1376
    %v1378 = vpop.f32.mrf.mxu0
    %v1379 = vadd.f32 %v1278, %v1378
    %1380 = vdwg.mxu0
    %v1381 = vadd.f32 %v1330, %v1332
    %v1382 = vadd.f32 %v1381, %v1373
    %v1383 = vadd.f32 %v1382, %v1375
    %1384 = vadd.xlane.f32.xlu0 %v1383
    %v1385 = vpop.xlane.xlu0 %1384
    %v1386 = vadd.f32 %v1334, %v1336
    %v1387 = vadd.f32 %v1386, %v1377
    %v1388 = vadd.f32 %v1387, %v1379
    %1389 = vadd.xlane.f32.xlu0 %v1388
    %v1390 = vpop.xlane.xlu0 %1389
    %v1391 = vmul.f32 %v1385, %v79
    %v1392 = vmul.f32 %v1390, %v79
    %v1393 = vsub.f32 %v1330, %v1391
    %v1394 = vsub.f32 %v1332, %v1391
    %v1395 = vsub.f32 %v1373, %v1391
    %v1396 = vsub.f32 %v1375, %v1391
    %v1397 = vsub.f32 %v1334, %v1392
    %v1398 = vsub.f32 %v1336, %v1392
    %v1399 = vsub.f32 %v1377, %v1392
    %v1400 = vsub.f32 %v1379, %v1392
    %v1401 = vmul.f32 %v1393, %v1393
    %v1402 = vmul.f32 %v1394, %v1394
    %v1403 = vmul.f32 %v1395, %v1395
    %v1404 = vmul.f32 %v1396, %v1396
    %v1405 = vmul.f32 %v1397, %v1397
    %v1406 = vmul.f32 %v1398, %v1398
    %v1407 = vmul.f32 %v1399, %v1399
    %v1408 = vmul.f32 %v1400, %v1400
    %v1409 = vadd.f32 %v1401, %v1402
    %v1410 = vadd.f32 %v1409, %v1403
    %v1411 = vadd.f32 %v1410, %v1404
    %1412 = vadd.xlane.f32.xlu0 %v1411
    %v1413 = vpop.xlane.xlu0 %1412
    %v1414 = vadd.f32 %v1405, %v1406
    %v1415 = vadd.f32 %v1414, %v1407
    %v1416 = vadd.f32 %v1415, %v1408
    %1417 = vadd.xlane.f32.xlu0 %v1416
    %v1418 = vpop.xlane.xlu0 %1417
    %v1419 = vmul.f32 %v1413, %v79
    %v1420 = vmul.f32 %v1418, %v79
    %v1421 = vadd.f32 %v1419, 1e-05
    %v1422 = vadd.f32 %v1420, 1e-05
    %v1423 = vrsqrt.pop %v1421
    %v1424 = vrsqrt.pop %v1422
    %v1425 = vmul.f32 %v1393, %v1423
    %v1426 = vmul.f32 %v1394, %v1423
    %v1427 = vmul.f32 %v1395, %v1423
    %v1428 = vmul.f32 %v1396, %v1423
    %v1429 = vmul.f32 %v1397, %v1424
    %v1430 = vmul.f32 %v1398, %v1424
    %v1431 = vmul.f32 %v1399, %v1424
    %v1432 = vmul.f32 %v1400, %v1424
    %v1433 = vld [vmem:[%s14] sm:$0xff]
    %v1434 = vld [vmem:[%s14 + $0x8] sm:$0xff]
    %1436 = vset.pattern.permute.xlu0 0
    %1437 = vperm.xlu0 %1436, %v1433
    %v1438 = vpop.permute.xlu0 %1437
    %1441 = vset.pattern.permute.xlu0 0
    %1442 = vperm.xlu0 %1441, %v1434
    %v1443 = vpop.permute.xlu0 %1442
    %v1445 = vmul.f32 %v1425, %v1438
    %v1446 = vmul.f32 %v1426, %v1438
    %v1447 = vmul.f32 %v1427, %v1438
    %v1448 = vmul.f32 %v1428, %v1438
    %v1449 = vmul.f32 %v1429, %v1443
    %v1450 = vmul.f32 %v1430, %v1443
    %v1451 = vmul.f32 %v1431, %v1443
    %v1452 = vmul.f32 %v1432, %v1443
    %v1453 = vld [vmem:[%s15] sm:$0xff]
    %v1454 = vld [vmem:[%s15 + $0x8] sm:$0xff]
    %1456 = vset.pattern.permute.xlu0 0
    %1457 = vperm.xlu0 %1456, %v1453
    %v1458 = vpop.permute.xlu0 %1457
    %1461 = vset.pattern.permute.xlu0 0
    %1462 = vperm.xlu0 %1461, %v1454
    %v1463 = vpop.permute.xlu0 %1462
    %v1465 = vadd.f32 %v1445, %v1458
    %v1466 = vadd.f32 %v1446, %v1458
    %v1467 = vadd.f32 %v1447, %v1458
    %v1468 = vadd.f32 %v1448, %v1458
    %v1469 = vadd.f32 %v1449, %v1463
    %v1470 = vadd.f32 %v1450, %v1463
    %v1471 = vadd.f32 %v1451, %v1463
    %v1472 = vadd.f32 %v1452, %v1463
    %vm1473 = vcmp.gt.f32.partialorder %v1465, 0.0
    %vm1474 = vcmp.gt.f32.partialorder %v1466, 0.0
    %vm1475 = vcmp.gt.f32.partialorder %v1467, 0.0
    %vm1476 = vcmp.gt.f32.partialorder %v1468, 0.0
    %vm1477 = vcmp.gt.f32.partialorder %v1469, 0.0
    %vm1478 = vcmp.gt.f32.partialorder %v1470, 0.0
    %vm1479 = vcmp.gt.f32.partialorder %v1471, 0.0
    %vm1480 = vcmp.gt.f32.partialorder %v1472, 0.0
    %v1481 = vmin.f32 %v1465, 0.0
    %v1482 = vmin.f32 %v1466, 0.0
    %v1483 = vmin.f32 %v1467, 0.0
    %v1484 = vmin.f32 %v1468, 0.0
    %v1485 = vmin.f32 %v1469, 0.0
    %v1486 = vmin.f32 %v1470, 0.0
    %v1487 = vmin.f32 %v1471, 0.0
    %v1488 = vmin.f32 %v1472, 0.0
    %v1489 = vmul.f32 %v1481, 1.442695
    %v1490 = vpow.pop %v1489
    %v1491 = vmul.f32 %v1482, 1.442695
    %v1492 = vpow.pop %v1491
    %v1493 = vmul.f32 %v1483, 1.442695
    %v1494 = vpow.pop %v1493
    %v1495 = vmul.f32 %v1484, 1.442695
    %v1496 = vpow.pop %v1495
    %v1497 = vmul.f32 %v1485, 1.442695
    %v1498 = vpow.pop %v1497
    %v1499 = vmul.f32 %v1486, 1.442695
    %v1500 = vpow.pop %v1499
    %v1501 = vmul.f32 %v1487, 1.442695
    %v1502 = vpow.pop %v1501
    %v1503 = vmul.f32 %v1488, 1.442695
    %v1504 = vpow.pop %v1503
    %v1505 = vsub.f32 %v1490, 1.0
    %v1506 = vsub.f32 %v1492, 1.0
    %v1507 = vsub.f32 %v1494, 1.0
    %v1508 = vsub.f32 %v1496, 1.0
    %v1509 = vsub.f32 %v1498, 1.0
    %v1510 = vsub.f32 %v1500, 1.0
    %v1511 = vsub.f32 %v1502, 1.0
    %v1512 = vsub.f32 %v1504, 1.0
    %v1513 = vsel %vm1473, %v1465, %v1505
    %v1514 = vsel %vm1474, %v1466, %v1506
    %v1515 = vsel %vm1475, %v1467, %v1507
    %v1516 = vsel %vm1476, %v1468, %v1508
    %v1517 = vsel %vm1477, %v1469, %v1509
    %v1518 = vsel %vm1478, %v1470, %v1510
    %v1519 = vsel %vm1479, %v1471, %v1511
    %v1520 = vsel %vm1480, %v1472, %v1512
    %1521 = vrot.lane.b32.xlu0 %v1513, 17
    %v1522 = vpop.permute.xlu0 %1521
    %1523 = vrot.lane.b32.xlu0 %v1517, 17
    %v1524 = vpop.permute.xlu0 %1523
    %1525 = vrot.lane.b32.xlu0 %v1514, 17
    %v1526 = vpop.permute.xlu0 %1525
    %1527 = vrot.lane.b32.xlu0 %v1518, 17
    %v1528 = vpop.permute.xlu0 %1527
    %1529 = vrot.lane.b32.xlu0 %v1515, 17
    %v1530 = vpop.permute.xlu0 %1529
    %1531 = vrot.lane.b32.xlu0 %v1519, 17
    %v1532 = vpop.permute.xlu0 %1531
    %1533 = vrot.lane.b32.xlu0 %v1516, 17
    %v1534 = vpop.permute.xlu0 %1533
    %1535 = vrot.lane.b32.xlu0 %v1520, 17
    %v1536 = vpop.permute.xlu0 %1535
    %v1537 = vsel %vm439, %v1530, %v1534
    %v1538 = vsel %vm439, %v1532, %v1536
    %v1539 = vsel %vm439, %v1526, %v1530
    %v1540 = vsel %vm439, %v1528, %v1532
    %v1541 = vsel %vm439, %v1522, %v1526
    %v1542 = vsel %vm439, %v1524, %v1528
    %v1543 = vsel %vm439, %v1534, %v1522
    %v1544 = vsel %vm439, %v1536, %v1524
    %v1545 = vld [vmem:[%s1] sm:$0xf]
    %v1547 = vlaneseq
    %v1548 = vshrl.u32 %v1547, 7
    %v1549 = vsub.s32 0, %v1548
    %v1550 = vrot.slane %v1545, %v1549
    %v1551 = vlaneseq
    %v1552 = vshrl.u32 %v1551, 7
    %v1553 = vsub.s32 1, %v1552
    %v1554 = vrot.slane %v1545, %v1553
    %v1555 = vlaneseq
    %v1556 = vshrl.u32 %v1555, 7
    %v1557 = vsub.s32 2, %v1556
    %v1558 = vrot.slane %v1545, %v1557
    %v1559 = vlaneseq
    %v1560 = vshrl.u32 %v1559, 7
    %v1561 = vsub.s32 3, %v1560
    %v1562 = vrot.slane %v1545, %v1561
    %v1567 = vmul.f32 %v1543, %v1550
    %v1568 = vmul.f32 %v1541, %v1554
    %v1569 = vmul.f32 %v1539, %v1558
    %v1570 = vmul.f32 %v1537, %v1562
    %v1571 = vmul.f32 %v1544, %v1550
    %v1572 = vmul.f32 %v1542, %v1554
    %v1573 = vmul.f32 %v1540, %v1558
    %v1574 = vmul.f32 %v1538, %v1562
    %1575 = vrot.lane.b32.xlu0 %v1513, 16
    %v1576 = vpop.permute.xlu0 %1575
    %1577 = vrot.lane.b32.xlu0 %v1517, 16
    %v1578 = vpop.permute.xlu0 %1577
    %1579 = vrot.lane.b32.xlu0 %v1514, 16
    %v1580 = vpop.permute.xlu0 %1579
    %1581 = vrot.lane.b32.xlu0 %v1518, 16
    %v1582 = vpop.permute.xlu0 %1581
    %1583 = vrot.lane.b32.xlu0 %v1515, 16
    %v1584 = vpop.permute.xlu0 %1583
    %1585 = vrot.lane.b32.xlu0 %v1519, 16
    %v1586 = vpop.permute.xlu0 %1585
    %1587 = vrot.lane.b32.xlu0 %v1516, 16
    %v1588 = vpop.permute.xlu0 %1587
    %1589 = vrot.lane.b32.xlu0 %v1520, 16
    %v1590 = vpop.permute.xlu0 %1589
    %v1591 = vsel %vm494, %v1584, %v1588
    %v1592 = vsel %vm494, %v1586, %v1590
    %v1593 = vsel %vm494, %v1580, %v1584
    %v1594 = vsel %vm494, %v1582, %v1586
    %v1595 = vsel %vm494, %v1576, %v1580
    %v1596 = vsel %vm494, %v1578, %v1582
    %v1597 = vsel %vm494, %v1588, %v1576
    %v1598 = vsel %vm494, %v1590, %v1578
    %v1599 = vld [vmem:[%s503] sm:$0xf]
    %v1601 = vlaneseq
    %v1602 = vshrl.u32 %v1601, 7
    %v1603 = vsub.s32 0, %v1602
    %v1604 = vrot.slane %v1599, %v1603
    %v1605 = vlaneseq
    %v1606 = vshrl.u32 %v1605, 7
    %v1607 = vsub.s32 1, %v1606
    %v1608 = vrot.slane %v1599, %v1607
    %v1609 = vlaneseq
    %v1610 = vshrl.u32 %v1609, 7
    %v1611 = vsub.s32 2, %v1610
    %v1612 = vrot.slane %v1599, %v1611
    %v1613 = vlaneseq
    %v1614 = vshrl.u32 %v1613, 7
    %v1615 = vsub.s32 3, %v1614
    %v1616 = vrot.slane %v1599, %v1615
    %v1621 = vmul.f32 %v1597, %v1604
    %v1622 = vmul.f32 %v1595, %v1608
    %v1623 = vmul.f32 %v1593, %v1612
    %v1624 = vmul.f32 %v1591, %v1616
    %v1625 = vmul.f32 %v1598, %v1604
    %v1626 = vmul.f32 %v1596, %v1608
    %v1627 = vmul.f32 %v1594, %v1612
    %v1628 = vmul.f32 %v1592, %v1616
    %1629 = vrot.lane.b32.xlu0 %v1513, 15
    %v1630 = vpop.permute.xlu0 %1629
    %1631 = vrot.lane.b32.xlu0 %v1517, 15
    %v1632 = vpop.permute.xlu0 %1631
    %1633 = vrot.lane.b32.xlu0 %v1514, 15
    %v1634 = vpop.permute.xlu0 %1633
    %1635 = vrot.lane.b32.xlu0 %v1518, 15
    %v1636 = vpop.permute.xlu0 %1635
    %1637 = vrot.lane.b32.xlu0 %v1515, 15
    %v1638 = vpop.permute.xlu0 %1637
    %1639 = vrot.lane.b32.xlu0 %v1519, 15
    %v1640 = vpop.permute.xlu0 %1639
    %1641 = vrot.lane.b32.xlu0 %v1516, 15
    %v1642 = vpop.permute.xlu0 %1641
    %1643 = vrot.lane.b32.xlu0 %v1520, 15
    %v1644 = vpop.permute.xlu0 %1643
    %v1645 = vsel %vm550, %v1638, %v1642
    %v1646 = vsel %vm550, %v1640, %v1644
    %v1647 = vsel %vm550, %v1634, %v1638
    %v1648 = vsel %vm550, %v1636, %v1640
    %v1649 = vsel %vm550, %v1630, %v1634
    %v1650 = vsel %vm550, %v1632, %v1636
    %v1651 = vsel %vm550, %v1642, %v1630
    %v1652 = vsel %vm550, %v1644, %v1632
    %v1653 = vld [vmem:[%s559] sm:$0xf]
    %v1655 = vlaneseq
    %v1656 = vshrl.u32 %v1655, 7
    %v1657 = vsub.s32 0, %v1656
    %v1658 = vrot.slane %v1653, %v1657
    %v1659 = vlaneseq
    %v1660 = vshrl.u32 %v1659, 7
    %v1661 = vsub.s32 1, %v1660
    %v1662 = vrot.slane %v1653, %v1661
    %v1663 = vlaneseq
    %v1664 = vshrl.u32 %v1663, 7
    %v1665 = vsub.s32 2, %v1664
    %v1666 = vrot.slane %v1653, %v1665
    %v1667 = vlaneseq
    %v1668 = vshrl.u32 %v1667, 7
    %v1669 = vsub.s32 3, %v1668
    %v1670 = vrot.slane %v1653, %v1669
    %v1675 = vmul.f32 %v1651, %v1658
    %v1676 = vmul.f32 %v1649, %v1662
    %v1677 = vmul.f32 %v1647, %v1666
    %v1678 = vmul.f32 %v1645, %v1670
    %v1679 = vmul.f32 %v1652, %v1658
    %v1680 = vmul.f32 %v1650, %v1662
    %v1681 = vmul.f32 %v1648, %v1666
    %v1682 = vmul.f32 %v1646, %v1670
    %1683 = vrot.lane.b32.xlu0 %v1513, 1
    %v1684 = vpop.permute.xlu0 %1683
    %1685 = vrot.lane.b32.xlu0 %v1517, 1
    %v1686 = vpop.permute.xlu0 %1685
    %1687 = vrot.lane.b32.xlu0 %v1514, 1
    %v1688 = vpop.permute.xlu0 %1687
    %1689 = vrot.lane.b32.xlu0 %v1518, 1
    %v1690 = vpop.permute.xlu0 %1689
    %1691 = vrot.lane.b32.xlu0 %v1515, 1
    %v1692 = vpop.permute.xlu0 %1691
    %1693 = vrot.lane.b32.xlu0 %v1519, 1
    %v1694 = vpop.permute.xlu0 %1693
    %1695 = vrot.lane.b32.xlu0 %v1516, 1
    %v1696 = vpop.permute.xlu0 %1695
    %1697 = vrot.lane.b32.xlu0 %v1520, 1
    %v1698 = vpop.permute.xlu0 %1697
    %v1699 = vsel %vm606, %v1692, %v1696
    %v1700 = vsel %vm606, %v1694, %v1698
    %v1701 = vsel %vm606, %v1688, %v1692
    %v1702 = vsel %vm606, %v1690, %v1694
    %v1703 = vsel %vm606, %v1684, %v1688
    %v1704 = vsel %vm606, %v1686, %v1690
    %v1705 = vsel %vm606, %v1696, %v1684
    %v1706 = vsel %vm606, %v1698, %v1686
    %v1707 = vld [vmem:[%s615] sm:$0xf]
    %v1709 = vlaneseq
    %v1710 = vshrl.u32 %v1709, 7
    %v1711 = vsub.s32 0, %v1710
    %v1712 = vrot.slane %v1707, %v1711
    %v1713 = vlaneseq
    %v1714 = vshrl.u32 %v1713, 7
    %v1715 = vsub.s32 1, %v1714
    %v1716 = vrot.slane %v1707, %v1715
    %v1717 = vlaneseq
    %v1718 = vshrl.u32 %v1717, 7
    %v1719 = vsub.s32 2, %v1718
    %v1720 = vrot.slane %v1707, %v1719
    %v1721 = vlaneseq
    %v1722 = vshrl.u32 %v1721, 7
    %v1723 = vsub.s32 3, %v1722
    %v1724 = vrot.slane %v1707, %v1723
    %v1729 = vmul.f32 %v1705, %v1712
    %v1730 = vmul.f32 %v1703, %v1716
    %v1731 = vmul.f32 %v1701, %v1720
    %v1732 = vmul.f32 %v1699, %v1724
    %v1733 = vmul.f32 %v1706, %v1712
    %v1734 = vmul.f32 %v1704, %v1716
    %v1735 = vmul.f32 %v1702, %v1720
    %v1736 = vmul.f32 %v1700, %v1724
    %v1737 = vld [vmem:[%s646] sm:$0xf]
    %v1739 = vlaneseq
    %v1740 = vshrl.u32 %v1739, 7
    %v1741 = vsub.s32 0, %v1740
    %v1742 = vrot.slane %v1737, %v1741
    %v1743 = vlaneseq
    %v1744 = vshrl.u32 %v1743, 7
    %v1745 = vsub.s32 1, %v1744
    %v1746 = vrot.slane %v1737, %v1745
    %v1747 = vlaneseq
    %v1748 = vshrl.u32 %v1747, 7
    %v1749 = vsub.s32 2, %v1748
    %v1750 = vrot.slane %v1737, %v1749
    %v1751 = vlaneseq
    %v1752 = vshrl.u32 %v1751, 7
    %v1753 = vsub.s32 3, %v1752
    %v1754 = vrot.slane %v1737, %v1753
    %v1759 = vmul.f32 %v1513, %v1742
    %v1760 = vmul.f32 %v1514, %v1746
    %v1761 = vmul.f32 %v1515, %v1750
    %v1762 = vmul.f32 %v1516, %v1754
    %v1763 = vmul.f32 %v1517, %v1742
    %v1764 = vmul.f32 %v1518, %v1746
    %v1765 = vmul.f32 %v1519, %v1750
    %v1766 = vmul.f32 %v1520, %v1754
    %1767 = vrot.lane.b32.xlu0 %v1513, 127
    %v1768 = vpop.permute.xlu0 %1767
    %1769 = vrot.lane.b32.xlu0 %v1517, 127
    %v1770 = vpop.permute.xlu0 %1769
    %1771 = vrot.lane.b32.xlu0 %v1514, 127
    %v1772 = vpop.permute.xlu0 %1771
    %1773 = vrot.lane.b32.xlu0 %v1518, 127
    %v1774 = vpop.permute.xlu0 %1773
    %1775 = vrot.lane.b32.xlu0 %v1515, 127
    %v1776 = vpop.permute.xlu0 %1775
    %1777 = vrot.lane.b32.xlu0 %v1519, 127
    %v1778 = vpop.permute.xlu0 %1777
    %1779 = vrot.lane.b32.xlu0 %v1516, 127
    %v1780 = vpop.permute.xlu0 %1779
    %1781 = vrot.lane.b32.xlu0 %v1520, 127
    %v1782 = vpop.permute.xlu0 %1781
    %v1783 = vsel %vm693, %v1776, %v1780
    %v1784 = vsel %vm693, %v1778, %v1782
    %v1785 = vsel %vm693, %v1772, %v1776
    %v1786 = vsel %vm693, %v1774, %v1778
    %v1787 = vsel %vm693, %v1768, %v1772
    %v1788 = vsel %vm693, %v1770, %v1774
    %v1789 = vsel %vm693, %v1780, %v1768
    %v1790 = vsel %vm693, %v1782, %v1770
    %v1791 = vld [vmem:[%s702] sm:$0xf]
    %v1793 = vlaneseq
    %v1794 = vshrl.u32 %v1793, 7
    %v1795 = vsub.s32 0, %v1794
    %v1796 = vrot.slane %v1791, %v1795
    %v1797 = vlaneseq
    %v1798 = vshrl.u32 %v1797, 7
    %v1799 = vsub.s32 1, %v1798
    %v1800 = vrot.slane %v1791, %v1799
    %v1801 = vlaneseq
    %v1802 = vshrl.u32 %v1801, 7
    %v1803 = vsub.s32 2, %v1802
    %v1804 = vrot.slane %v1791, %v1803
    %v1805 = vlaneseq
    %v1806 = vshrl.u32 %v1805, 7
    %v1807 = vsub.s32 3, %v1806
    %v1808 = vrot.slane %v1791, %v1807
    %v1813 = vmul.f32 %v1787, %v1796
    %v1814 = vmul.f32 %v1785, %v1800
    %v1815 = vmul.f32 %v1783, %v1804
    %v1816 = vmul.f32 %v1789, %v1808
    %v1817 = vmul.f32 %v1788, %v1796
    %v1818 = vmul.f32 %v1786, %v1800
    %v1819 = vmul.f32 %v1784, %v1804
    %v1820 = vmul.f32 %v1790, %v1808
    %1821 = vrot.lane.b32.xlu0 %v1513, 113
    %v1822 = vpop.permute.xlu0 %1821
    %1823 = vrot.lane.b32.xlu0 %v1517, 113
    %v1824 = vpop.permute.xlu0 %1823
    %1825 = vrot.lane.b32.xlu0 %v1514, 113
    %v1826 = vpop.permute.xlu0 %1825
    %1827 = vrot.lane.b32.xlu0 %v1518, 113
    %v1828 = vpop.permute.xlu0 %1827
    %1829 = vrot.lane.b32.xlu0 %v1515, 113
    %v1830 = vpop.permute.xlu0 %1829
    %1831 = vrot.lane.b32.xlu0 %v1519, 113
    %v1832 = vpop.permute.xlu0 %1831
    %1833 = vrot.lane.b32.xlu0 %v1516, 113
    %v1834 = vpop.permute.xlu0 %1833
    %1835 = vrot.lane.b32.xlu0 %v1520, 113
    %v1836 = vpop.permute.xlu0 %1835
    %v1837 = vsel %vm749, %v1830, %v1834
    %v1838 = vsel %vm749, %v1832, %v1836
    %v1839 = vsel %vm749, %v1826, %v1830
    %v1840 = vsel %vm749, %v1828, %v1832
    %v1841 = vsel %vm749, %v1822, %v1826
    %v1842 = vsel %vm749, %v1824, %v1828
    %v1843 = vsel %vm749, %v1834, %v1822
    %v1844 = vsel %vm749, %v1836, %v1824
    %v1845 = vld [vmem:[%s758] sm:$0xf]
    %v1847 = vlaneseq
    %v1848 = vshrl.u32 %v1847, 7
    %v1849 = vsub.s32 0, %v1848
    %v1850 = vrot.slane %v1845, %v1849
    %v1851 = vlaneseq
    %v1852 = vshrl.u32 %v1851, 7
    %v1853 = vsub.s32 1, %v1852
    %v1854 = vrot.slane %v1845, %v1853
    %v1855 = vlaneseq
    %v1856 = vshrl.u32 %v1855, 7
    %v1857 = vsub.s32 2, %v1856
    %v1858 = vrot.slane %v1845, %v1857
    %v1859 = vlaneseq
    %v1860 = vshrl.u32 %v1859, 7
    %v1861 = vsub.s32 3, %v1860
    %v1862 = vrot.slane %v1845, %v1861
    %v1867 = vmul.f32 %v1841, %v1850
    %v1868 = vmul.f32 %v1839, %v1854
    %v1869 = vmul.f32 %v1837, %v1858
    %v1870 = vmul.f32 %v1843, %v1862
    %v1871 = vmul.f32 %v1842, %v1850
    %v1872 = vmul.f32 %v1840, %v1854
    %v1873 = vmul.f32 %v1838, %v1858
    %v1874 = vmul.f32 %v1844, %v1862
    %1875 = vrot.lane.b32.xlu0 %v1513, 112
    %v1876 = vpop.permute.xlu0 %1875
    %1877 = vrot.lane.b32.xlu0 %v1517, 112
    %v1878 = vpop.permute.xlu0 %1877
    %1879 = vrot.lane.b32.xlu0 %v1514, 112
    %v1880 = vpop.permute.xlu0 %1879
    %1881 = vrot.lane.b32.xlu0 %v1518, 112
    %v1882 = vpop.permute.xlu0 %1881
    %1883 = vrot.lane.b32.xlu0 %v1515, 112
    %v1884 = vpop.permute.xlu0 %1883
    %1885 = vrot.lane.b32.xlu0 %v1519, 112
    %v1886 = vpop.permute.xlu0 %1885
    %1887 = vrot.lane.b32.xlu0 %v1516, 112
    %v1888 = vpop.permute.xlu0 %1887
    %1889 = vrot.lane.b32.xlu0 %v1520, 112
    %v1890 = vpop.permute.xlu0 %1889
    %v1891 = vsel %vm805, %v1884, %v1888
    %v1892 = vsel %vm805, %v1886, %v1890
    %v1893 = vsel %vm805, %v1880, %v1884
    %v1894 = vsel %vm805, %v1882, %v1886
    %v1895 = vsel %vm805, %v1876, %v1880
    %v1896 = vsel %vm805, %v1878, %v1882
    %v1897 = vsel %vm805, %v1888, %v1876
    %v1898 = vsel %vm805, %v1890, %v1878
    %v1899 = vld [vmem:[%s814] sm:$0xf]
    %v1901 = vlaneseq
    %v1902 = vshrl.u32 %v1901, 7
    %v1903 = vsub.s32 0, %v1902
    %v1904 = vrot.slane %v1899, %v1903
    %v1905 = vlaneseq
    %v1906 = vshrl.u32 %v1905, 7
    %v1907 = vsub.s32 1, %v1906
    %v1908 = vrot.slane %v1899, %v1907
    %v1909 = vlaneseq
    %v1910 = vshrl.u32 %v1909, 7
    %v1911 = vsub.s32 2, %v1910
    %v1912 = vrot.slane %v1899, %v1911
    %v1913 = vlaneseq
    %v1914 = vshrl.u32 %v1913, 7
    %v1915 = vsub.s32 3, %v1914
    %v1916 = vrot.slane %v1899, %v1915
    %v1921 = vmul.f32 %v1895, %v1904
    %v1922 = vmul.f32 %v1893, %v1908
    %v1923 = vmul.f32 %v1891, %v1912
    %v1924 = vmul.f32 %v1897, %v1916
    %v1925 = vmul.f32 %v1896, %v1904
    %v1926 = vmul.f32 %v1894, %v1908
    %v1927 = vmul.f32 %v1892, %v1912
    %v1928 = vmul.f32 %v1898, %v1916
    %1929 = vrot.lane.b32.xlu0 %v1513, 111
    %v1930 = vpop.permute.xlu0 %1929
    %1931 = vrot.lane.b32.xlu0 %v1517, 111
    %v1932 = vpop.permute.xlu0 %1931
    %1933 = vrot.lane.b32.xlu0 %v1514, 111
    %v1934 = vpop.permute.xlu0 %1933
    %1935 = vrot.lane.b32.xlu0 %v1518, 111
    %v1936 = vpop.permute.xlu0 %1935
    %1937 = vrot.lane.b32.xlu0 %v1515, 111
    %v1938 = vpop.permute.xlu0 %1937
    %1939 = vrot.lane.b32.xlu0 %v1519, 111
    %v1940 = vpop.permute.xlu0 %1939
    %1941 = vrot.lane.b32.xlu0 %v1516, 111
    %v1942 = vpop.permute.xlu0 %1941
    %1943 = vrot.lane.b32.xlu0 %v1520, 111
    %v1944 = vpop.permute.xlu0 %1943
    %v1945 = vsel %vm861, %v1938, %v1942
    %v1946 = vsel %vm861, %v1940, %v1944
    %v1947 = vsel %vm861, %v1934, %v1938
    %v1948 = vsel %vm861, %v1936, %v1940
    %v1949 = vsel %vm861, %v1930, %v1934
    %v1950 = vsel %vm861, %v1932, %v1936
    %v1951 = vsel %vm861, %v1942, %v1930
    %v1952 = vsel %vm861, %v1944, %v1932
    %v1953 = vld [vmem:[%s870] sm:$0xf]
    %v1955 = vlaneseq
    %v1956 = vshrl.u32 %v1955, 7
    %v1957 = vsub.s32 0, %v1956
    %v1958 = vrot.slane %v1953, %v1957
    %v1959 = vlaneseq
    %v1960 = vshrl.u32 %v1959, 7
    %v1961 = vsub.s32 1, %v1960
    %v1962 = vrot.slane %v1953, %v1961
    %v1963 = vlaneseq
    %v1964 = vshrl.u32 %v1963, 7
    %v1965 = vsub.s32 2, %v1964
    %v1966 = vrot.slane %v1953, %v1965
    %v1967 = vlaneseq
    %v1968 = vshrl.u32 %v1967, 7
    %v1969 = vsub.s32 3, %v1968
    %v1970 = vrot.slane %v1953, %v1969
    %v1975 = vmul.f32 %v1949, %v1958
    %v1976 = vmul.f32 %v1947, %v1962
    %v1977 = vmul.f32 %v1945, %v1966
    %v1978 = vmul.f32 %v1951, %v1970
    %v1979 = vmul.f32 %v1950, %v1958
    %v1980 = vmul.f32 %v1948, %v1962
    %v1981 = vmul.f32 %v1946, %v1966
    %v1982 = vmul.f32 %v1952, %v1970
    %v1983 = vld [vmem:[%s16] sm:$0xff]
    %v1985 = vcombine.high %v1983, %v1983
    %v1987 = vpack.c.bf16 %v1983, %v1983
    %v1988 = vpack.c.bf16 %v1985, %v1985
    %v1989 = vpack.c.bf16 %v1571, %v1567
    %v1990 = vpack.c.bf16 %v1572, %v1568
    %v1991 = vpack.c.bf16 %v1573, %v1569
    %v1992 = vpack.c.bf16 %v1574, %v1570
    %v1993 = vpack.c.bf16 %v1625, %v1621
    %v1994 = vpack.c.bf16 %v1626, %v1622
    %v1995 = vpack.c.bf16 %v1627, %v1623
    %v1996 = vpack.c.bf16 %v1628, %v1624
    %v1997 = vpack.c.bf16 %v1679, %v1675
    %v1998 = vpack.c.bf16 %v1680, %v1676
    %v1999 = vpack.c.bf16 %v1681, %v1677
    %v2000 = vpack.c.bf16 %v1682, %v1678
    %v2001 = vpack.c.bf16 %v1733, %v1729
    %v2002 = vpack.c.bf16 %v1734, %v1730
    %v2003 = vpack.c.bf16 %v1735, %v1731
    %v2004 = vpack.c.bf16 %v1736, %v1732
    %v2005 = vpack.c.bf16 %v1763, %v1759
    %v2006 = vpack.c.bf16 %v1764, %v1760
    %v2007 = vpack.c.bf16 %v1765, %v1761
    %v2008 = vpack.c.bf16 %v1766, %v1762
    %v2009 = vpack.c.bf16 %v1817, %v1813
    %v2010 = vpack.c.bf16 %v1818, %v1814
    %v2011 = vpack.c.bf16 %v1819, %v1815
    %v2012 = vpack.c.bf16 %v1820, %v1816
    %v2013 = vpack.c.bf16 %v1871, %v1867
    %v2014 = vpack.c.bf16 %v1872, %v1868
    %v2015 = vpack.c.bf16 %v1873, %v1869
    %v2016 = vpack.c.bf16 %v1874, %v1870
    %v2017 = vpack.c.bf16 %v1925, %v1921
    %v2018 = vpack.c.bf16 %v1926, %v1922
    %v2019 = vpack.c.bf16 %v1927, %v1923
    %v2020 = vpack.c.bf16 %v1928, %v1924
    %v2021 = vpack.c.bf16 %v1979, %v1975
    %v2022 = vpack.c.bf16 %v1980, %v1976
    %v2023 = vpack.c.bf16 %v1981, %v1977
    %v2024 = vpack.c.bf16 %v1982, %v1978
    %v2026 = vsel %vm943, %v1988, 0
    %2028 = vmatprep.subr.bf16.mxu0 %v2018
    %2029 = vmatpush1.bf16.msra.mxu0 %v2017
    %2030 = vmatprep.subr.bf16.mxu0 %v2014
    %2031 = vmatpush1.bf16.msra.mxu0 %v2013
    %2032 = vmatprep.subr.bf16.mxu0 %v2010
    %2033 = vmatpush1.bf16.msra.mxu0 %v2009
    %2034 = vmatprep.subr.bf16.mxu0 %v2006
    %2035 = vmatpush1.bf16.msra.mxu0 %v2005
    %2036 = vmatprep.subr.bf16.mxu0 %v2002
    %2037 = vmatpush1.bf16.msra.mxu0 %v2001
    %2038 = vmatprep.subr.bf16.mxu0 %v1998
    %2039 = vmatpush1.bf16.msra.mxu0 %v1997
    %2040 = vmatprep.subr.bf16.mxu0 %v1994
    %2041 = vmatpush1.bf16.msra.mxu0 %v1993
    %2042 = vmatprep.subr.bf16.mxu0 %v1990
    %2043 = vmatpush1.bf16.msra.mxu0 %v1989
    %2044 = vmatprep.subr.bf16.mxu0 0
    %2045 = vmatpush2.bf16.msra.mxu0 0
    %2046 = vmatprep.subr.bf16.mxu0 0
    %2047 = vmatpush2.bf16.msra.mxu0 0
    %2048 = vmatprep.subr.bf16.mxu0 0
    %2049 = vmatpush2.bf16.msra.mxu0 0
    %2050 = vmatprep.subr.bf16.mxu0 0
    %2051 = vmatpush2.bf16.msra.mxu0 0
    %2052 = vmatprep.subr.bf16.mxu0 0
    %2053 = vmatpush2.bf16.msra.mxu0 0
    %2054 = vmatprep.subr.bf16.mxu0 0
    %2055 = vmatpush2.bf16.msra.mxu0 0
    %2056 = vmatprep.subr.bf16.mxu0 0
    %2057 = vmatpush2.bf16.msra.mxu0 0
    %2058 = vmatprep.subr.bf16.mxu0 %v2022
    %2059 = vmatpush2.bf16.msra.mxu0 %v2021
    %2060 = vmatprep.mubr.bf16.mxu0 %v2026
    %2061 = vmatmul.mubr.bf16.gmra.mxu0 %v1987
    %v2062 = vpop.f32.mrf.mxu0
    %v2063 = vadd.f32 0.0, %v2062
    %v2064 = vpop.f32.mrf.mxu0
    %v2065 = vadd.f32 0.0, %v2064
    %v2066 = vpop.f32.mrf.mxu0
    %v2067 = vpop.f32.mrf.mxu0
    %2068 = vdwg.mxu0
    %2069 = vmatprep.subr.bf16.mxu0 %v2020
    %2070 = vmatpush1.bf16.msra.mxu0 %v2019
    %2071 = vmatprep.subr.bf16.mxu0 %v2016
    %2072 = vmatpush1.bf16.msra.mxu0 %v2015
    %2073 = vmatprep.subr.bf16.mxu0 %v2012
    %2074 = vmatpush1.bf16.msra.mxu0 %v2011
    %2075 = vmatprep.subr.bf16.mxu0 %v2008
    %2076 = vmatpush1.bf16.msra.mxu0 %v2007
    %2077 = vmatprep.subr.bf16.mxu0 %v2004
    %2078 = vmatpush1.bf16.msra.mxu0 %v2003
    %2079 = vmatprep.subr.bf16.mxu0 %v2000
    %2080 = vmatpush1.bf16.msra.mxu0 %v1999
    %2081 = vmatprep.subr.bf16.mxu0 %v1996
    %2082 = vmatpush1.bf16.msra.mxu0 %v1995
    %2083 = vmatprep.subr.bf16.mxu0 %v1992
    %2084 = vmatpush1.bf16.msra.mxu0 %v1991
    %2085 = vmatprep.subr.bf16.mxu0 0
    %2086 = vmatpush2.bf16.msra.mxu0 0
    %2087 = vmatprep.subr.bf16.mxu0 0
    %2088 = vmatpush2.bf16.msra.mxu0 0
    %2089 = vmatprep.subr.bf16.mxu0 0
    %2090 = vmatpush2.bf16.msra.mxu0 0
    %2091 = vmatprep.subr.bf16.mxu0 0
    %2092 = vmatpush2.bf16.msra.mxu0 0
    %2093 = vmatprep.subr.bf16.mxu0 0
    %2094 = vmatpush2.bf16.msra.mxu0 0
    %2095 = vmatprep.subr.bf16.mxu0 0
    %2096 = vmatpush2.bf16.msra.mxu0 0
    %2097 = vmatprep.subr.bf16.mxu0 0
    %2098 = vmatpush2.bf16.msra.mxu0 0
    %2099 = vmatprep.subr.bf16.mxu0 %v2024
    %2100 = vmatpush2.bf16.msra.mxu0 %v2023
    %2101 = vmatprep.mubr.bf16.mxu0 %v2026
    %2102 = vmatmul.mubr.bf16.gmra.mxu0 %v1987
    %v2103 = vpop.f32.mrf.mxu0
    %v2104 = vadd.f32 0.0, %v2103
    %v2105 = vpop.f32.mrf.mxu0
    %v2106 = vadd.f32 0.0, %v2105
    %v2107 = vpop.f32.mrf.mxu0
    %v2108 = vpop.f32.mrf.mxu0
    %2109 = vdwg.mxu0
    %v2114 = vcombine.low %v2063, %v2065
    %v2115 = vcombine.low %v2104, %v2106
    %2118 = vst [vmem:[#allocation4] sm:$0xff] %v2114
    %2119 = vst [vmem:[#allocation4 + $0x8] sm:$0xff] %v2115
    // Predicated region
    $region70: #{tpu_custom_call.1} parent=1 // pred_check
      _
    $region71: #{tpu_custom_call.1} parent=1 // pred_check_branch
      %2121 = sbr.rel (0) target = $region73
    $region72: #{tpu_custom_call.1} parent=1 // pred_region
      %s2123 = ssub.s32 256, 256
      %2124 = vsyncadd [#allocation3], %s2123
      %s2126 = sshll.u32 [#allocation2], 4
      %s2127 = int_to_ptr.vmem [resolvable:$true] %s2126
      %2129 = dma.vmem_to_hbm [thread:$0]  %s2127, 256, %s17, [#allocation3]
    $region73: #{tpu_custom_call.1} parent=1 // pred_fallthru
      _
    // Predicated region
    $region74: #{tpu_custom_call.1} parent=1 // pred_check
      _
    $region75: #{tpu_custom_call.1} parent=1 // pred_check_branch
      %2131 = sbr.rel (0) target = $region77
    $region76: #{tpu_custom_call.1} parent=1 // pred_region
      %s2133 = ssub.s32 256, 256
      %2134 = vsyncadd [#allocation5], %s2133
      %s2136 = sshll.u32 [#allocation4], 4
      %s2137 = int_to_ptr.vmem [resolvable:$true] %s2136
      %2139 = dma.vmem_to_hbm [thread:$0]  %s2137, 256, %s18, [#allocation5]
    $region77: #{tpu_custom_call.1} parent=1 // pred_fallthru
      _
    // Predicated region
    $region78: #{tpu_custom_call.1} parent=1 // pred_check
      _
    $region79: #{tpu_custom_call.1} parent=1 // pred_check_branch
      %2141 = sbr.rel (0) target = $region81
    $region80: #{tpu_custom_call.1} parent=1 // pred_region
      %2142 = dma.done [#allocation3], 256
    $region81: #{tpu_custom_call.1} parent=1 // pred_fallthru
      _
    // Predicated region
    $region82: #{tpu_custom_call.1} parent=1 // pred_check
      _
    $region83: #{tpu_custom_call.1} parent=1 // pred_check_branch
      %2144 = sbr.rel (0) target = $region85
    $region84: #{tpu_custom_call.1} parent=1 // pred_region
      %2145 = dma.done [#allocation5], 256
    $region85: #{tpu_custom_call.1} parent=1 // pred_fallthru
      _
    %2146 = vsyncpa [#allocation3], 1
    %2147 = vsyncpa [#allocation5], 1

</llo_original>
